<compile_context>
chip_gen: v6e
topology: v6e:2x2x1
jax: 0.10.0
libtpu: 0.0.40
codegen_flags: <defaults>
</compile_context>

<pallas_src>
import numpy as np
import jax
import jax.numpy as jnp
from jax.experimental import pallas as pl
from jax.experimental.pallas import tpu as pltpu

# ----------------------------- configuration --------------------------------
B = 2            # batch
CIN = 4          # in_channels
H = 32           # h_channels
OUT = 8          # out_channels
T0 = 16          # input time length
CONV_KERNELS = (3, 3)
PADDINGS = (1, 1)
POOLING_KERNELS = (2, 2)     # avg pooling, stride == kernel
L = len(CONV_KERNELS)
LN_EPS = 1e-5

T_SEQ = [T0]
for _pk in POOLING_KERNELS:
    T_SEQ.append(T_SEQ[-1] // _pk)
T1, T2 = T_SEQ[1], T_SEQ[2]

R0 = B * T0      # conv rows, layer 0 (batch folded into rows)
R1 = B * T1      # conv rows, layer 1
R2 = B * T2      # rows after final pooling


def _relu(x):
    return jnp.maximum(x, 0.0)


# ------------------------ static (structural) operators ----------------------
def _shift_matrices(t, k, pad):
    """[k, t, t]: S[j, i, i+j-pad] = 1 (zero outside the valid time range)."""
    s = np.zeros((k, t, t), np.float32)
    for j in range(k):
        for i in range(t):
            src = i + j - pad
            if 0 <= src < t:
                s[j, i, src] = 1.0
    return s


def _pool_matrix(t_in, pk):
    t_out = t_in // pk
    m = np.zeros((t_out, t_in), np.float32)
    for i in range(t_out):
        m[i, i * pk:(i + 1) * pk] = 1.0 / pk
    return m


def _block_diag(m, b):
    r, c = m.shape
    out = np.zeros((b * r, b * c), np.float32)
    for i in range(b):
        out[i * r:(i + 1) * r, i * c:(i + 1) * c] = m
    return out


def build_static_operators():
    k0, k1 = CONV_KERNELS
    p0, p1 = PADDINGS
    pk0, pk1 = POOLING_KERNELS

    # layer 0: per-tap shift matrices, block-diag over batch, stacked on rows
    s0 = _shift_matrices(T0, k0, p0)                                   # [k0,T0,T0]
    s0_stack = np.concatenate(
        [_block_diag(s0[j], B) for j in range(k0)], axis=0)            # [k0*R0, R0]

    # layer 1: shift fused with the layer-0 average pooling
    pool0 = _pool_matrix(T0, pk0)                                      # [T1, T0]
    s1 = _shift_matrices(T1, k1, p1)                                   # [k1,T1,T1]
    m1_stack = np.concatenate(
        [_block_diag(s1[j] @ pool0, B) for j in range(k1)], axis=0)    # [k1*R1, R0]

    # final pooling and per-batch time-mean, block-diag over batch
    pool1 = _block_diag(_pool_matrix(T1, pk1), B)                      # [R2, R1]
    mean_mat = _block_diag(np.full((1, T2), 1.0 / T2, np.float32), B)  # [B, R2]

    return dict(
        s0=jnp.asarray(s0_stack),
        m1=jnp.asarray(m1_stack),
        pool1=jnp.asarray(pool1),
        mean=jnp.asarray(mean_mat),
    )


# ------------------------------- the kernel ----------------------------------
def tiv_encoder_kernel(
    x_ref,       # [R0, CIN]        input, batch folded into rows
    w0_ref,      # [CIN, H]         conv_initial weight (transposed)
    b0_ref,      # [1, H]
    wc_ref,      # [L, K, H, H]     per-layer conv taps (transposed)
    bc_ref,      # [L, 1, H]
    s0_ref,      # [K*R0, R0]       stacked block-diag shift mats, layer 0
    m1_ref,      # [K*R1, R0]       stacked block-diag shift@pool mats, layer 1
    pool1_ref,   # [R2, R1]         block-diag avg-pool, layer 1
    mean_ref,    # [B, R2]          block-diag per-batch time mean
    gamma_ref,   # [1, H]           LayerNorm weight
    beta_ref,    # [1, H]           LayerNorm bias
    wl_ref,      # [H, 2*OUT]       Linear weight (transposed)
    bl_ref,      # [1, 2*OUT]
    out_ref,     # [B, 2*OUT]       mu | logs, merged
):
    f32 = jnp.float32

    # conv_initial: kernel_size=1 Conv1d == pointwise matmul over channels
    h0 = jnp.dot(x_ref[...], w0_ref[...], preferred_element_type=f32) + b0_ref[...]

    # ---- DownSampleEncBlk 0: conv(k) -> ReLU -> avgpool ----------------------
    # all k shifted copies come from ONE matmul with the stacked shift operator;
    # tap matmuls read tile-aligned row slices (multiples of 8 sublanes).
    t0 = jnp.dot(s0_ref[...], h0, preferred_element_type=f32)          # [K*R0, H]
    out0 = bc_ref[0]
    for j in range(CONV_KERNELS[0]):
        out0 = out0 + jnp.dot(t0[j * R0:(j + 1) * R0, :], wc_ref[0, j],
                              preferred_element_type=f32)
    c0 = _relu(out0)                                                   # [R0, H]

    # ---- DownSampleEncBlk 1 (shift fused with layer-0 pooling) ---------------
    t1 = jnp.dot(m1_ref[...], c0, preferred_element_type=f32)          # [K*R1, H]
    out1 = bc_ref[1]
    for j in range(CONV_KERNELS[1]):
        out1 = out1 + jnp.dot(t1[j * R1:(j + 1) * R1, :], wc_ref[1, j],
                              preferred_element_type=f32)
    c1 = _relu(out1)                                                   # [R1, H]

    # layer-1 average pooling, then the trailing activation
    h = _relu(jnp.dot(pool1_ref[...], c1, preferred_element_type=f32))  # [R2, H]

    # LayerNorm over channels (== torch permute/LayerNorm/permute)
    mean = jnp.mean(h, axis=-1, keepdims=True)
    var = jnp.mean((h - mean) ** 2, axis=-1, keepdims=True)
    h = (h - mean) * jax.lax.rsqrt(var + LN_EPS)
    h = h * gamma_ref[...] + beta_ref[...]

    # per-batch mean over time (block-diag averaging matrix) -> linear -> store
    pooled = jnp.dot(mean_ref[...], h, preferred_element_type=f32)     # [B, H]
    ml = jnp.dot(pooled, wl_ref[...], preferred_element_type=f32) + bl_ref[...]
    out_ref[...] = ml                                                  # [B, 2*OUT]


# ------------------------------- the wrapper ----------------------------------
def tiv_conv_encoder(x_ncl, params, ops):
    """x_ncl: [B, CIN, T0] (PyTorch NCL). Returns (mu, logs), each [B, OUT]."""
    # NCL -> NLC, then fold the batch into the row (sublane) axis.
    x = jnp.transpose(x_ncl, (0, 2, 1)).astype(jnp.float32).reshape(R0, CIN)

    inputs = (
        x,
        params["w0"], params["b0"], params["wc"], params["bc"],
        ops["s0"], ops["m1"], ops["pool1"], ops["mean"],
        params["gamma"], params["beta"], params["wl"], params["bl"],
    )

    def full_spec(arr):
        nd = arr.ndim
        return pl.BlockSpec(arr.shape, lambda i, _n=nd: (0,) * _n)

    ml = pl.pallas_call(
        tiv_encoder_kernel,
        grid=(1,),                                   # single step: whole batch
        in_specs=[full_spec(a) for a in inputs],
        out_specs=pl.BlockSpec((B, 2 * OUT), lambda i: (0, 0)),
        out_shape=jax.ShapeDtypeStruct((B, 2 * OUT), jnp.float32),
        compiler_params=pltpu.CompilerParams(
            dimension_semantics=("arbitrary",)),
    )(*inputs)

    return ml[:, :OUT], ml[:, OUT:]


# --------------------------- deterministic params -----------------------------
def init_params(key):
    ks = jax.random.split(key, 8)
    scale = 0.2
    kmax = max(CONV_KERNELS)

    # conv_initial: torch weight [H, CIN, 1] -> transposed tap [CIN, H]
    w0 = scale * jax.random.normal(ks[0], (CIN, H), jnp.float32)
    b0 = scale * jax.random.normal(ks[1], (1, H), jnp.float32)

    # per-layer conv taps: torch weight [H, H, K]; here wc[l, j] = W[:, :, j].T
    wc = scale * jax.random.normal(ks[2], (L, kmax, H, H), jnp.float32)
    bc = scale * jax.random.normal(ks[3], (L, 1, H), jnp.float32)

    gamma = 1.0 + 0.1 * jax.random.normal(ks[4], (1, H), jnp.float32)
    beta = 0.1 * jax.random.normal(ks[5], (1, H), jnp.float32)

    # mu_logs_linear: torch weight [2*OUT, H] -> transposed [H, 2*OUT]
    wl = scale * jax.random.normal(ks[6], (H, 2 * OUT), jnp.float32)
    bl = scale * jax.random.normal(ks[7], (1, 2 * OUT), jnp.float32)

    return dict(w0=w0, b0=b0, wc=wc, bc=bc, gamma=gamma, beta=beta, wl=wl, bl=bl)


# ------------------------------ pure-JAX reference ----------------------------
def reference(x_ncl, p):
    x = jnp.transpose(x_ncl, (0, 2, 1)).astype(jnp.float32)            # [B,T0,CIN]
    h = jnp.einsum("btc,ch->bth", x, p["w0"]) + p["b0"]
    for l in range(L):
        k, pad, pk = CONV_KERNELS[l], PADDINGS[l], POOLING_KERNELS[l]
        t = h.shape[1]
        hp = jnp.pad(h, ((0, 0), (pad, pad), (0, 0)))
        out = jnp.zeros_like(h)
        for j in range(k):
            out = out + jnp.einsum("btc,ch->bth", hp[:, j:j + t], p["wc"][l, j])
        out = _relu(out + p["bc"][l])
        h = out.reshape(B, t // pk, pk, H).mean(axis=2)                # AvgPool1d
    h = _relu(h)
    mean = jnp.mean(h, axis=-1, keepdims=True)
    var = jnp.mean((h - mean) ** 2, axis=-1, keepdims=True)
    h = (h - mean) / jnp.sqrt(var + LN_EPS) * p["gamma"] + p["beta"]
    hm = jnp.mean(h, axis=1)                                           # [B, H]
    ml = hm @ p["wl"] + p["bl"][0]
    return ml[:, :OUT], ml[:, OUT:]


# ----------------------------------- main --------------------------------------
if __name__ == "__main__":
    key = jax.random.PRNGKey(0)
    kx, kp = jax.random.split(key)
    x = jax.random.normal(kx, (B, CIN, T0), jnp.float32)   # [batch, channels, time]
    params = init_params(kp)
    ops = build_static_operators()

    mu, logs = tiv_conv_encoder(x, params, ops)
    jax.block_until_ready((mu, logs))

    mu_ref, logs_ref = reference(x, params)
    np.testing.assert_allclose(np.asarray(mu), np.asarray(mu_ref), atol=1e-4, rtol=1e-4)
    np.testing.assert_allclose(np.asarray(logs), np.asarray(logs_ref), atol=1e-4, rtol=1e-4)

    print("KERNEL_OK")
</pallas_src>

<mosaic_0001>
module attributes {stable_mosaic.version = 11 : i64} {
  func.func @tiv_encoder_kernel(%arg0: i32, %arg1: memref<32x4xf32, #tpu.memory_space<vmem>>, %arg2: memref<4x32xf32, #tpu.memory_space<vmem>>, %arg3: memref<1x32xf32, #tpu.memory_space<vmem>>, %arg4: memref<2x3x32x32xf32, #tpu.memory_space<vmem>>, %arg5: memref<2x1x32xf32, #tpu.memory_space<vmem>>, %arg6: memref<96x32xf32, #tpu.memory_space<vmem>>, %arg7: memref<48x32xf32, #tpu.memory_space<vmem>>, %arg8: memref<8x16xf32, #tpu.memory_space<vmem>>, %arg9: memref<2x8xf32, #tpu.memory_space<vmem>>, %arg10: memref<1x32xf32, #tpu.memory_space<vmem>>, %arg11: memref<1x32xf32, #tpu.memory_space<vmem>>, %arg12: memref<32x16xf32, #tpu.memory_space<vmem>>, %arg13: memref<1x16xf32, #tpu.memory_space<vmem>>, %arg14: memref<2x16xf32, #tpu.memory_space<vmem>>) attributes {dimension_semantics = [#tpu.dimension_semantics<arbitrary>], iteration_bounds = array<i64: 1>, scalar_prefetch = 0 : i64, scratch_operands = 0 : i64, tpu.core_type = #tpu.core_type<tc>, window_params = [{pipeline_mode = #tpu.pipeline_mode<synchronous>, transform_indices = @transform_0, window_bounds = array<i64: 32, 4>}, {pipeline_mode = #tpu.pipeline_mode<synchronous>, transform_indices = @transform_1, window_bounds = array<i64: 4, 32>}, {pipeline_mode = #tpu.pipeline_mode<synchronous>, transform_indices = @transform_2, window_bounds = array<i64: 1, 32>}, {pipeline_mode = #tpu.pipeline_mode<synchronous>, transform_indices = @transform_3, window_bounds = array<i64: 2, 3, 32, 32>}, {pipeline_mode = #tpu.pipeline_mode<synchronous>, transform_indices = @transform_4, window_bounds = array<i64: 2, 1, 32>}, {pipeline_mode = #tpu.pipeline_mode<synchronous>, transform_indices = @transform_5, window_bounds = array<i64: 96, 32>}, {pipeline_mode = #tpu.pipeline_mode<synchronous>, transform_indices = @transform_6, window_bounds = array<i64: 48, 32>}, {pipeline_mode = #tpu.pipeline_mode<synchronous>, transform_indices = @transform_7, window_bounds = array<i64: 8, 16>}, {pipeline_mode = #tpu.pipeline_mode<synchronous>, transform_indices = @transform_8, window_bounds = array<i64: 2, 8>}, {pipeline_mode = #tpu.pipeline_mode<synchronous>, transform_indices = @transform_9, window_bounds = array<i64: 1, 32>}, {pipeline_mode = #tpu.pipeline_mode<synchronous>, transform_indices = @transform_10, window_bounds = array<i64: 1, 32>}, {pipeline_mode = #tpu.pipeline_mode<synchronous>, transform_indices = @transform_11, window_bounds = array<i64: 32, 16>}, {pipeline_mode = #tpu.pipeline_mode<synchronous>, transform_indices = @transform_12, window_bounds = array<i64: 1, 16>}, {pipeline_mode = #tpu.pipeline_mode<synchronous>, transform_indices = @transform_13, window_bounds = array<i64: 2, 16>}]} {
    %c0 = arith.constant 0 : index
    %c0_0 = arith.constant 0 : index
    %0 = vector.load %arg1[%c0, %c0_0] : memref<32x4xf32, #tpu.memory_space<vmem>>, vector<32x4xf32>
    %c0_1 = arith.constant 0 : index
    %c0_2 = arith.constant 0 : index
    %1 = vector.load %arg2[%c0_1, %c0_2] : memref<4x32xf32, #tpu.memory_space<vmem>>, vector<4x32xf32>
    %cst = arith.constant dense<0.000000e+00> : vector<32x32xf32>
    %2 = tpu.matmul %0, %1, %cst {dimension_numbers = #tpu.dot_dimension_numbers<[1], [0], [0], [1], [0, 0, 1, 1], [], []>} : vector<32x4xf32>, vector<4x32xf32>, vector<32x32xf32> -> vector<32x32xf32>
    %c0_3 = arith.constant 0 : index
    %c0_4 = arith.constant 0 : index
    %3 = vector.load %arg3[%c0_3, %c0_4] : memref<1x32xf32, #tpu.memory_space<vmem>>, vector<1x32xf32>
    %4 = vector.broadcast %3 : vector<1x32xf32> to vector<32x32xf32>
    %5 = arith.addf %2, %4 : vector<32x32xf32>
    %c0_5 = arith.constant 0 : index
    %c0_6 = arith.constant 0 : index
    %6 = vector.load %arg6[%c0_5, %c0_6] : memref<96x32xf32, #tpu.memory_space<vmem>>, vector<96x32xf32>
    %cst_7 = arith.constant dense<0.000000e+00> : vector<96x32xf32>
    %7 = tpu.matmul %6, %5, %cst_7 {dimension_numbers = #tpu.dot_dimension_numbers<[1], [0], [0], [1], [0, 0, 1, 1], [], []>} : vector<96x32xf32>, vector<32x32xf32>, vector<96x32xf32> -> vector<96x32xf32>
    %c0_8 = arith.constant 0 : index
    %c0_9 = arith.constant 0 : index
    %c0_10 = arith.constant 0 : index
    %8 = vector.load %arg5[%c0_8, %c0_9, %c0_10] : memref<2x1x32xf32, #tpu.memory_space<vmem>>, vector<1x1x32xf32>
    %9 = vector.shape_cast %8 : vector<1x1x32xf32> to vector<1x32xf32>
    %10 = vector.extract_strided_slice %7 {offsets = [0, 0], sizes = [32, 32], strides = [1, 1]} : vector<96x32xf32> to vector<32x32xf32>
    %c0_11 = arith.constant 0 : index
    %c0_12 = arith.constant 0 : index
    %c0_13 = arith.constant 0 : index
    %c0_14 = arith.constant 0 : index
    %11 = vector.load %arg4[%c0_11, %c0_12, %c0_13, %c0_14] : memref<2x3x32x32xf32, #tpu.memory_space<vmem>>, vector<1x1x32x32xf32>
    %12 = vector.shape_cast %11 : vector<1x1x32x32xf32> to vector<32x32xf32>
    %cst_15 = arith.constant dense<0.000000e+00> : vector<32x32xf32>
    %13 = tpu.matmul %10, %12, %cst_15 {dimension_numbers = #tpu.dot_dimension_numbers<[1], [0], [0], [1], [0, 0, 1, 1], [], []>} : vector<32x32xf32>, vector<32x32xf32>, vector<32x32xf32> -> vector<32x32xf32>
    %14 = vector.broadcast %9 : vector<1x32xf32> to vector<32x32xf32>
    %15 = arith.addf %14, %13 : vector<32x32xf32>
    %16 = vector.extract_strided_slice %7 {offsets = [32, 0], sizes = [32, 32], strides = [1, 1]} : vector<96x32xf32> to vector<32x32xf32>
    %c0_16 = arith.constant 0 : index
    %c1 = arith.constant 1 : index
    %c0_17 = arith.constant 0 : index
    %c0_18 = arith.constant 0 : index
    %17 = vector.load %arg4[%c0_16, %c1, %c0_17, %c0_18] : memref<2x3x32x32xf32, #tpu.memory_space<vmem>>, vector<1x1x32x32xf32>
    %18 = vector.shape_cast %17 : vector<1x1x32x32xf32> to vector<32x32xf32>
    %cst_19 = arith.constant dense<0.000000e+00> : vector<32x32xf32>
    %19 = tpu.matmul %16, %18, %cst_19 {dimension_numbers = #tpu.dot_dimension_numbers<[1], [0], [0], [1], [0, 0, 1, 1], [], []>} : vector<32x32xf32>, vector<32x32xf32>, vector<32x32xf32> -> vector<32x32xf32>
    %20 = arith.addf %15, %19 : vector<32x32xf32>
    %21 = vector.extract_strided_slice %7 {offsets = [64, 0], sizes = [32, 32], strides = [1, 1]} : vector<96x32xf32> to vector<32x32xf32>
    %c0_20 = arith.constant 0 : index
    %c2 = arith.constant 2 : index
    %c0_21 = arith.constant 0 : index
    %c0_22 = arith.constant 0 : index
    %22 = vector.load %arg4[%c0_20, %c2, %c0_21, %c0_22] : memref<2x3x32x32xf32, #tpu.memory_space<vmem>>, vector<1x1x32x32xf32>
    %23 = vector.shape_cast %22 : vector<1x1x32x32xf32> to vector<32x32xf32>
    %cst_23 = arith.constant dense<0.000000e+00> : vector<32x32xf32>
    %24 = tpu.matmul %21, %23, %cst_23 {dimension_numbers = #tpu.dot_dimension_numbers<[1], [0], [0], [1], [0, 0, 1, 1], [], []>} : vector<32x32xf32>, vector<32x32xf32>, vector<32x32xf32> -> vector<32x32xf32>
    %25 = arith.addf %20, %24 : vector<32x32xf32>
    %cst_24 = arith.constant 0.000000e+00 : f32
    %26 = vector.broadcast %cst_24 : f32 to vector<32x32xf32>
    %27 = arith.maximumf %25, %26 : vector<32x32xf32>
    %c0_25 = arith.constant 0 : index
    %c0_26 = arith.constant 0 : index
    %28 = vector.load %arg7[%c0_25, %c0_26] : memref<48x32xf32, #tpu.memory_space<vmem>>, vector<48x32xf32>
    %cst_27 = arith.constant dense<0.000000e+00> : vector<48x32xf32>
    %29 = tpu.matmul %28, %27, %cst_27 {dimension_numbers = #tpu.dot_dimension_numbers<[1], [0], [0], [1], [0, 0, 1, 1], [], []>} : vector<48x32xf32>, vector<32x32xf32>, vector<48x32xf32> -> vector<48x32xf32>
    %c1_28 = arith.constant 1 : index
    %c0_29 = arith.constant 0 : index
    %c0_30 = arith.constant 0 : index
    %30 = vector.load %arg5[%c1_28, %c0_29, %c0_30] : memref<2x1x32xf32, #tpu.memory_space<vmem>>, vector<1x1x32xf32>
    %31 = vector.shape_cast %30 : vector<1x1x32xf32> to vector<1x32xf32>
    %32 = vector.extract_strided_slice %29 {offsets = [0, 0], sizes = [16, 32], strides = [1, 1]} : vector<48x32xf32> to vector<16x32xf32>
    %c1_31 = arith.constant 1 : index
    %c0_32 = arith.constant 0 : index
    %c0_33 = arith.constant 0 : index
    %c0_34 = arith.constant 0 : index
    %33 = vector.load %arg4[%c1_31, %c0_32, %c0_33, %c0_34] : memref<2x3x32x32xf32, #tpu.memory_space<vmem>>, vector<1x1x32x32xf32>
    %34 = vector.shape_cast %33 : vector<1x1x32x32xf32> to vector<32x32xf32>
    %cst_35 = arith.constant dense<0.000000e+00> : vector<16x32xf32>
    %35 = tpu.matmul %32, %34, %cst_35 {dimension_numbers = #tpu.dot_dimension_numbers<[1], [0], [0], [1], [0, 0, 1, 1], [], []>} : vector<16x32xf32>, vector<32x32xf32>, vector<16x32xf32> -> vector<16x32xf32>
    %36 = vector.broadcast %31 : vector<1x32xf32> to vector<16x32xf32>
    %37 = arith.addf %36, %35 : vector<16x32xf32>
    %38 = vector.extract_strided_slice %29 {offsets = [16, 0], sizes = [16, 32], strides = [1, 1]} : vector<48x32xf32> to vector<16x32xf32>
    %c1_36 = arith.constant 1 : index
    %c1_37 = arith.constant 1 : index
    %c0_38 = arith.constant 0 : index
    %c0_39 = arith.constant 0 : index
    %39 = vector.load %arg4[%c1_36, %c1_37, %c0_38, %c0_39] : memref<2x3x32x32xf32, #tpu.memory_space<vmem>>, vector<1x1x32x32xf32>
    %40 = vector.shape_cast %39 : vector<1x1x32x32xf32> to vector<32x32xf32>
    %cst_40 = arith.constant dense<0.000000e+00> : vector<16x32xf32>
    %41 = tpu.matmul %38, %40, %cst_40 {dimension_numbers = #tpu.dot_dimension_numbers<[1], [0], [0], [1], [0, 0, 1, 1], [], []>} : vector<16x32xf32>, vector<32x32xf32>, vector<16x32xf32> -> vector<16x32xf32>
    %42 = arith.addf %37, %41 : vector<16x32xf32>
    %43 = vector.extract_strided_slice %29 {offsets = [32, 0], sizes = [16, 32], strides = [1, 1]} : vector<48x32xf32> to vector<16x32xf32>
    %c1_41 = arith.constant 1 : index
    %c2_42 = arith.constant 2 : index
    %c0_43 = arith.constant 0 : index
    %c0_44 = arith.constant 0 : index
    %44 = vector.load %arg4[%c1_41, %c2_42, %c0_43, %c0_44] : memref<2x3x32x32xf32, #tpu.memory_space<vmem>>, vector<1x1x32x32xf32>
    %45 = vector.shape_cast %44 : vector<1x1x32x32xf32> to vector<32x32xf32>
    %cst_45 = arith.constant dense<0.000000e+00> : vector<16x32xf32>
    %46 = tpu.matmul %43, %45, %cst_45 {dimension_numbers = #tpu.dot_dimension_numbers<[1], [0], [0], [1], [0, 0, 1, 1], [], []>} : vector<16x32xf32>, vector<32x32xf32>, vector<16x32xf32> -> vector<16x32xf32>
    %47 = arith.addf %42, %46 : vector<16x32xf32>
    %cst_46 = arith.constant 0.000000e+00 : f32
    %48 = vector.broadcast %cst_46 : f32 to vector<16x32xf32>
    %49 = arith.maximumf %47, %48 : vector<16x32xf32>
    %c0_47 = arith.constant 0 : index
    %c0_48 = arith.constant 0 : index
    %50 = vector.load %arg8[%c0_47, %c0_48] : memref<8x16xf32, #tpu.memory_space<vmem>>, vector<8x16xf32>
    %cst_49 = arith.constant dense<0.000000e+00> : vector<8x32xf32>
    %51 = tpu.matmul %50, %49, %cst_49 {dimension_numbers = #tpu.dot_dimension_numbers<[1], [0], [0], [1], [0, 0, 1, 1], [], []>} : vector<8x16xf32>, vector<16x32xf32>, vector<8x32xf32> -> vector<8x32xf32>
    %cst_50 = arith.constant 0.000000e+00 : f32
    %52 = vector.broadcast %cst_50 : f32 to vector<8x32xf32>
    %53 = arith.maximumf %51, %52 : vector<8x32xf32>
    %cst_51 = arith.constant dense<0.000000e+00> : vector<8xf32>
    %54 = vector.multi_reduction <add>, %53, %cst_51 [1] : vector<8x32xf32> to vector<8xf32>
    %55 = vector.shape_cast %54 : vector<8xf32> to vector<8x1xf32>
    %cst_52 = arith.constant 3.200000e+01 : f32
    %56 = vector.broadcast %cst_52 : f32 to vector<8x1xf32>
    %57 = arith.divf %55, %56 : vector<8x1xf32>
    %58 = vector.broadcast %57 : vector<8x1xf32> to vector<8x32xf32>
    %59 = arith.subf %53, %58 : vector<8x32xf32>
    %60 = arith.mulf %59, %59 : vector<8x32xf32>
    %cst_53 = arith.constant dense<0.000000e+00> : vector<8xf32>
    %61 = vector.multi_reduction <add>, %60, %cst_53 [1] : vector<8x32xf32> to vector<8xf32>
    %62 = vector.shape_cast %61 : vector<8xf32> to vector<8x1xf32>
    %cst_54 = arith.constant 3.200000e+01 : f32
    %63 = vector.broadcast %cst_54 : f32 to vector<8x1xf32>
    %64 = arith.divf %62, %63 : vector<8x1xf32>
    %65 = vector.broadcast %57 : vector<8x1xf32> to vector<8x32xf32>
    %66 = arith.subf %53, %65 : vector<8x32xf32>
    %cst_55 = arith.constant 9.99999974E-6 : f32
    %67 = vector.broadcast %cst_55 : f32 to vector<8x1xf32>
    %68 = arith.addf %64, %67 : vector<8x1xf32>
    %69 = math.rsqrt %68 : vector<8x1xf32>
    %70 = vector.broadcast %69 : vector<8x1xf32> to vector<8x32xf32>
    %71 = arith.mulf %66, %70 : vector<8x32xf32>
    %c0_56 = arith.constant 0 : index
    %c0_57 = arith.constant 0 : index
    %72 = vector.load %arg10[%c0_56, %c0_57] : memref<1x32xf32, #tpu.memory_space<vmem>>, vector<1x32xf32>
    %73 = vector.broadcast %72 : vector<1x32xf32> to vector<8x32xf32>
    %74 = arith.mulf %71, %73 : vector<8x32xf32>
    %c0_58 = arith.constant 0 : index
    %c0_59 = arith.constant 0 : index
    %75 = vector.load %arg11[%c0_58, %c0_59] : memref<1x32xf32, #tpu.memory_space<vmem>>, vector<1x32xf32>
    %76 = vector.broadcast %75 : vector<1x32xf32> to vector<8x32xf32>
    %77 = arith.addf %74, %76 : vector<8x32xf32>
    %c0_60 = arith.constant 0 : index
    %c0_61 = arith.constant 0 : index
    %78 = vector.load %arg9[%c0_60, %c0_61] : memref<2x8xf32, #tpu.memory_space<vmem>>, vector<2x8xf32>
    %cst_62 = arith.constant dense<0.000000e+00> : vector<2x32xf32>
    %79 = tpu.matmul %78, %77, %cst_62 {dimension_numbers = #tpu.dot_dimension_numbers<[1], [0], [0], [1], [0, 0, 1, 1], [], []>} : vector<2x8xf32>, vector<8x32xf32>, vector<2x32xf32> -> vector<2x32xf32>
    %c0_63 = arith.constant 0 : index
    %c0_64 = arith.constant 0 : index
    %80 = vector.load %arg12[%c0_63, %c0_64] : memref<32x16xf32, #tpu.memory_space<vmem>>, vector<32x16xf32>
    %cst_65 = arith.constant dense<0.000000e+00> : vector<2x16xf32>
    %81 = tpu.matmul %79, %80, %cst_65 {dimension_numbers = #tpu.dot_dimension_numbers<[1], [0], [0], [1], [0, 0, 1, 1], [], []>} : vector<2x32xf32>, vector<32x16xf32>, vector<2x16xf32> -> vector<2x16xf32>
    %c0_66 = arith.constant 0 : index
    %c0_67 = arith.constant 0 : index
    %82 = vector.load %arg13[%c0_66, %c0_67] : memref<1x16xf32, #tpu.memory_space<vmem>>, vector<1x16xf32>
    %83 = vector.broadcast %82 : vector<1x16xf32> to vector<2x16xf32>
    %84 = arith.addf %81, %83 : vector<2x16xf32>
    %c0_68 = arith.constant 0 : index
    %c0_69 = arith.constant 0 : index
    %85 = vector.load %arg14[%c0_68, %c0_69] : memref<2x16xf32, #tpu.memory_space<vmem>>, vector<2x16xf32>
    tpu.vector_store %arg14[%c0_68, %c0_69], %84 {strides = array<i32>} : memref<2x16xf32, #tpu.memory_space<vmem>>, vector<2x16xf32>,
    return
  }
  func.func @transform_0(%arg0: i32) -> (i32, i32) {
    %c0_i32 = arith.constant 0 : i32
    %c0_i32_0 = arith.constant 0 : i32
    %c0_i32_1 = arith.constant 0 : i32
    return %c0_i32, %c0_i32_0 : i32, i32
  }
  func.func @transform_1(%arg0: i32) -> (i32, i32) {
    %c0_i32 = arith.constant 0 : i32
    %c0_i32_0 = arith.constant 0 : i32
    %c0_i32_1 = arith.constant 0 : i32
    return %c0_i32, %c0_i32_0 : i32, i32
  }
  func.func @transform_2(%arg0: i32) -> (i32, i32) {
    %c0_i32 = arith.constant 0 : i32
    %c0_i32_0 = arith.constant 0 : i32
    %c0_i32_1 = arith.constant 0 : i32
    return %c0_i32, %c0_i32_0 : i32, i32
  }
  func.func @transform_3(%arg0: i32) -> (i32, i32, i32, i32) {
    %c0_i32 = arith.constant 0 : i32
    %c0_i32_0 = arith.constant 0 : i32
    %c0_i32_1 = arith.constant 0 : i32
    %c0_i32_2 = arith.constant 0 : i32
    %c0_i32_3 = arith.constant 0 : i32
    return %c0_i32, %c0_i32_0, %c0_i32_1, %c0_i32_2 : i32, i32, i32, i32
  }
  func.func @transform_4(%arg0: i32) -> (i32, i32, i32) {
    %c0_i32 = arith.constant 0 : i32
    %c0_i32_0 = arith.constant 0 : i32
    %c0_i32_1 = arith.constant 0 : i32
    %c0_i32_2 = arith.constant 0 : i32
    return %c0_i32, %c0_i32_0, %c0_i32_1 : i32, i32, i32
  }
  func.func @transform_5(%arg0: i32) -> (i32, i32) {
    %c0_i32 = arith.constant 0 : i32
    %c0_i32_0 = arith.constant 0 : i32
    %c0_i32_1 = arith.constant 0 : i32
    return %c0_i32, %c0_i32_0 : i32, i32
  }
  func.func @transform_6(%arg0: i32) -> (i32, i32) {
    %c0_i32 = arith.constant 0 : i32
    %c0_i32_0 = arith.constant 0 : i32
    %c0_i32_1 = arith.constant 0 : i32
    return %c0_i32, %c0_i32_0 : i32, i32
  }
  func.func @transform_7(%arg0: i32) -> (i32, i32) {
    %c0_i32 = arith.constant 0 : i32
    %c0_i32_0 = arith.constant 0 : i32
    %c0_i32_1 = arith.constant 0 : i32
    return %c0_i32, %c0_i32_0 : i32, i32
  }
  func.func @transform_8(%arg0: i32) -> (i32, i32) {
    %c0_i32 = arith.constant 0 : i32
    %c0_i32_0 = arith.constant 0 : i32
    %c0_i32_1 = arith.constant 0 : i32
    return %c0_i32, %c0_i32_0 : i32, i32
  }
  func.func @transform_9(%arg0: i32) -> (i32, i32) {
    %c0_i32 = arith.constant 0 : i32
    %c0_i32_0 = arith.constant 0 : i32
    %c0_i32_1 = arith.constant 0 : i32
    return %c0_i32, %c0_i32_0 : i32, i32
  }
  func.func @transform_10(%arg0: i32) -> (i32, i32) {
    %c0_i32 = arith.constant 0 : i32
    %c0_i32_0 = arith.constant 0 : i32
    %c0_i32_1 = arith.constant 0 : i32
    return %c0_i32, %c0_i32_0 : i32, i32
  }
  func.func @transform_11(%arg0: i32) -> (i32, i32) {
    %c0_i32 = arith.constant 0 : i32
    %c0_i32_0 = arith.constant 0 : i32
    %c0_i32_1 = arith.constant 0 : i32
    return %c0_i32, %c0_i32_0 : i32, i32
  }
  func.func @transform_12(%arg0: i32) -> (i32, i32) {
    %c0_i32 = arith.constant 0 : i32
    %c0_i32_0 = arith.constant 0 : i32
    %c0_i32_1 = arith.constant 0 : i32
    return %c0_i32, %c0_i32_0 : i32, i32
  }
  func.func @transform_13(%arg0: i32) -> (i32, i32) {
    %c0_i32 = arith.constant 0 : i32
    %c0_i32_0 = arith.constant 0 : i32
    %c0_i32_1 = arith.constant 0 : i32
    return %c0_i32, %c0_i32_0 : i32, i32
  }
}

</mosaic_0001>

<llo_original>
// kernel: tpu_custom_call.1
$region0: #{tpu_custom_call.1}
  #allocation0 [shape = 'u32[]', space=smem, size = 0x4, offset = 0x4, fixed_abs, tag = 'smem constant byte address 0x4 - core index']
  #allocation1 [shape = 'u32[144,128]{1,0:T(1,128)}', space=vmem, size = 0x12000, scoped, tag = 'internal scratch']
  %s0 = inlined_call_operand.vmem [shape: f32[32,4], index: 0, kind: input, shape index: {}]
  %s1 = inlined_call_operand.vmem [shape: f32[4,32], index: 1, kind: input, shape index: {}]
  %s2 = inlined_call_operand.vmem [shape: f32[1,32], index: 2, kind: input, shape index: {}]
  %s3 = inlined_call_operand.vmem [shape: f32[2,3,32,32], index: 3, kind: input, shape index: {}]
  %s4 = inlined_call_operand.vmem [shape: f32[2,1,32], index: 4, kind: input, shape index: {}]
  %s5 = inlined_call_operand.vmem [shape: f32[96,32], index: 5, kind: input, shape index: {}]
  %s6 = inlined_call_operand.vmem [shape: f32[48,32], index: 6, kind: input, shape index: {}]
  %s7 = inlined_call_operand.vmem [shape: f32[8,16], index: 7, kind: input, shape index: {}]
  %s8 = inlined_call_operand.vmem [shape: f32[2,8], index: 8, kind: input, shape index: {}]
  %s9 = inlined_call_operand.vmem [shape: f32[1,32], index: 9, kind: input, shape index: {}]
  %s10 = inlined_call_operand.vmem [shape: f32[1,32], index: 10, kind: input, shape index: {}]
  %s11 = inlined_call_operand.vmem [shape: f32[32,16], index: 11, kind: input, shape index: {}]
  %s12 = inlined_call_operand.vmem [shape: f32[1,16], index: 12, kind: input, shape index: {}]
  %s13 = inlined_call_operand.hbm [shape: f32[2,16], index: 13, kind: output, shape index: {}]
  %s14 = sld [smem:[#allocation0]]
  $region62: #{tpu_custom_call.1} parent=0
    _
  %s16 = ssub.s32 1, %s14
  %s17 = scalar_select 0, %s16, %s14
  $region1: #{tpu_custom_call.1} parent=0
    #allocation2 [shape = 'u8[1024]{0}', space=vmem, size = 0x400, scoped, tag = 'output window, operand 0, single buffered']
    #allocation3 [shape = 's32[1]{0}', space=sflag, size = 0x4, scoped, tag = 'scoped memory for tpu_custom_call.1']
    %18 = vsyncpa [#allocation3], 0
    // Predicated region
    $region2: #{tpu_custom_call.1} parent=1 // pred_check
      _
    $region3: #{tpu_custom_call.1} parent=1 // pred_check_branch
      %20 = sbr.rel (0) target = $region5
    $region4: #{tpu_custom_call.1} parent=1 // pred_region
      _
    $region5: #{tpu_custom_call.1} parent=1 // pred_fallthru
      _
    // Predicated region
    $region6: #{tpu_custom_call.1} parent=1 // pred_check
      _
    $region7: #{tpu_custom_call.1} parent=1 // pred_check_branch
      %22 = sbr.rel (0) target = $region9
    $region8: #{tpu_custom_call.1} parent=1 // pred_region
      _
    $region9: #{tpu_custom_call.1} parent=1 // pred_fallthru
      _
    // Predicated region
    $region10: #{tpu_custom_call.1} parent=1 // pred_check
      _
    $region11: #{tpu_custom_call.1} parent=1 // pred_check_branch
      %24 = sbr.rel (0) target = $region13
    $region12: #{tpu_custom_call.1} parent=1 // pred_region
      _
    $region13: #{tpu_custom_call.1} parent=1 // pred_fallthru
      _
    // Predicated region
    $region14: #{tpu_custom_call.1} parent=1 // pred_check
      _
    $region15: #{tpu_custom_call.1} parent=1 // pred_check_branch
      %26 = sbr.rel (0) target = $region17
    $region16: #{tpu_custom_call.1} parent=1 // pred_region
      _
    $region17: #{tpu_custom_call.1} parent=1 // pred_fallthru
      _
    // Predicated region
    $region18: #{tpu_custom_call.1} parent=1 // pred_check
      _
    $region19: #{tpu_custom_call.1} parent=1 // pred_check_branch
      %28 = sbr.rel (0) target = $region21
    $region20: #{tpu_custom_call.1} parent=1 // pred_region
      _
    $region21: #{tpu_custom_call.1} parent=1 // pred_fallthru
      _
    // Predicated region
    $region22: #{tpu_custom_call.1} parent=1 // pred_check
      _
    $region23: #{tpu_custom_call.1} parent=1 // pred_check_branch
      %30 = sbr.rel (0) target = $region25
    $region24: #{tpu_custom_call.1} parent=1 // pred_region
      _
    $region25: #{tpu_custom_call.1} parent=1 // pred_fallthru
      _
    // Predicated region
    $region26: #{tpu_custom_call.1} parent=1 // pred_check
      _
    $region27: #{tpu_custom_call.1} parent=1 // pred_check_branch
      %32 = sbr.rel (0) target = $region29
    $region28: #{tpu_custom_call.1} parent=1 // pred_region
      _
    $region29: #{tpu_custom_call.1} parent=1 // pred_fallthru
      _
    // Predicated region
    $region30: #{tpu_custom_call.1} parent=1 // pred_check
      _
    $region31: #{tpu_custom_call.1} parent=1 // pred_check_branch
      %34 = sbr.rel (0) target = $region33
    $region32: #{tpu_custom_call.1} parent=1 // pred_region
      _
    $region33: #{tpu_custom_call.1} parent=1 // pred_fallthru
      _
    // Predicated region
    $region34: #{tpu_custom_call.1} parent=1 // pred_check
      _
    $region35: #{tpu_custom_call.1} parent=1 // pred_check_branch
      %36 = sbr.rel (0) target = $region37
    $region36: #{tpu_custom_call.1} parent=1 // pred_region
      _
    $region37: #{tpu_custom_call.1} parent=1 // pred_fallthru
      _
    // Predicated region
    $region38: #{tpu_custom_call.1} parent=1 // pred_check
      _
    $region39: #{tpu_custom_call.1} parent=1 // pred_check_branch
      %38 = sbr.rel (0) target = $region41
    $region40: #{tpu_custom_call.1} parent=1 // pred_region
      _
    $region41: #{tpu_custom_call.1} parent=1 // pred_fallthru
      _
    // Predicated region
    $region42: #{tpu_custom_call.1} parent=1 // pred_check
      _
    $region43: #{tpu_custom_call.1} parent=1 // pred_check_branch
      %40 = sbr.rel (0) target = $region45
    $region44: #{tpu_custom_call.1} parent=1 // pred_region
      _
    $region45: #{tpu_custom_call.1} parent=1 // pred_fallthru
      _
    // Predicated region
    $region46: #{tpu_custom_call.1} parent=1 // pred_check
      _
    $region47: #{tpu_custom_call.1} parent=1 // pred_check_branch
      %42 = sbr.rel (0) target = $region49
    $region48: #{tpu_custom_call.1} parent=1 // pred_region
      _
    $region49: #{tpu_custom_call.1} parent=1 // pred_fallthru
      _
    // Predicated region
    $region50: #{tpu_custom_call.1} parent=1 // pred_check
      _
    $region51: #{tpu_custom_call.1} parent=1 // pred_check_branch
      %44 = sbr.rel (0) target = $region53
    $region52: #{tpu_custom_call.1} parent=1 // pred_region
      _
    $region53: #{tpu_custom_call.1} parent=1 // pred_fallthru
      _
    %v45 = vld [vmem:[%s0] sm:$0xff]
    %v46 = vld [vmem:[%s0 + $0x8] sm:$0xff]
    %v47 = vld [vmem:[%s0 + $0x10] sm:$0xff]
    %v48 = vld [vmem:[%s0 + $0x18] sm:$0xff]
    %v49 = vld [vmem:[%s1] sm:$0xf]
    %v50 = vld [vmem:[%s2] sm:$0x1]
    %v52 = vlaneseq
    %v53 = vshrl.u32 %v52, 7
    %v54 = vsub.s32 0, %v53
    %v55 = vrot.slane %v50, %v54
    %vm57 = vcmask 31744
    %v59 = vsel %vm57, %v45, 0
    %v62 = vsel %vm57, %v46, 0
    %v65 = vsel %vm57, %v47, 0
    %v68 = vsel %vm57, %v48, 0
    %vm70 = vcmask 1043456
    %v72 = vsel %vm70, %v49, 0
    %74 = vmatprep.subr.mxu0 0.0
    %75 = vmatpush1.msra.mxu0 0.0
    %76 = vmatprep.subr.mxu0 0.0
    %77 = vmatpush1.msra.mxu0 0.0
    %78 = vmatprep.subr.mxu0 0.0
    %79 = vmatpush1.msra.mxu0 0.0
    %80 = vmatprep.subr.mxu0 0.0
    %81 = vmatpush1.msra.mxu0 0.0
    %82 = vmatprep.subr.mxu0 0.0
    %83 = vmatpush1.msra.mxu0 0.0
    %84 = vmatprep.subr.mxu0 0.0
    %85 = vmatpush1.msra.mxu0 0.0
    %86 = vmatprep.subr.mxu0 0.0
    %87 = vmatpush1.msra.mxu0 0.0
    %88 = vmatprep.subr.mxu0 0.0
    %89 = vmatpush1.msra.mxu0 0.0
    %90 = vmatprep.subr.mxu0 0.0
    %91 = vmatpush1.msra.mxu0 0.0
    %92 = vmatprep.subr.mxu0 0.0
    %93 = vmatpush1.msra.mxu0 0.0
    %94 = vmatprep.subr.mxu0 0.0
    %95 = vmatpush1.msra.mxu0 0.0
    %96 = vmatprep.subr.mxu0 0.0
    %97 = vmatpush1.msra.mxu0 0.0
    %98 = vmatprep.subr.mxu0 0.0
    %99 = vmatpush1.msra.mxu0 0.0
    %100 = vmatprep.subr.mxu0 0.0
    %101 = vmatpush1.msra.mxu0 0.0
    %102 = vmatprep.subr.mxu0 0.0
    %103 = vmatpush1.msra.mxu0 0.0
    %104 = vmatprep.subr.mxu0 0.0
    %105 = vmatpush1.msra.mxu0 %v72
    %106 = vmatprep.subr.mxu0 0.0
    %107 = vmatpush2.msra.mxu0 0.0
    %108 = vmatprep.subr.mxu0 0.0
    %109 = vmatpush2.msra.mxu0 0.0
    %110 = vmatprep.subr.mxu0 0.0
    %111 = vmatpush2.msra.mxu0 0.0
    %112 = vmatprep.subr.mxu0 0.0
    %113 = vmatpush2.msra.mxu0 0.0
    %114 = vmatprep.subr.mxu0 0.0
    %115 = vmatpush2.msra.mxu0 0.0
    %116 = vmatprep.subr.mxu0 0.0
    %117 = vmatpush2.msra.mxu0 0.0
    %118 = vmatprep.subr.mxu0 0.0
    %119 = vmatpush2.msra.mxu0 0.0
    %120 = vmatprep.subr.mxu0 0.0
    %121 = vmatpush2.msra.mxu0 0.0
    %122 = vmatprep.subr.mxu0 0.0
    %123 = vmatpush2.msra.mxu0 0.0
    %124 = vmatprep.subr.mxu0 0.0
    %125 = vmatpush2.msra.mxu0 0.0
    %126 = vmatprep.subr.mxu0 0.0
    %127 = vmatpush2.msra.mxu0 0.0
    %128 = vmatprep.subr.mxu0 0.0
    %129 = vmatpush2.msra.mxu0 0.0
    %130 = vmatprep.subr.mxu0 0.0
    %131 = vmatpush2.msra.mxu0 0.0
    %132 = vmatprep.subr.mxu0 0.0
    %133 = vmatpush2.msra.mxu0 0.0
    %134 = vmatprep.subr.mxu0 0.0
    %135 = vmatpush2.msra.mxu0 0.0
    %136 = vmatprep.subr.mxu0 0.0
    %137 = vmatpush2.msra.mxu0 0.0
    %138 = vmatprep.mubr.f32.mxu0 0.0
    %139 = vmatmul.mubr.f32.gmra.mxu0 %v59
    %v140 = vpop.f32.mrf.mxu0
    %v141 = vadd.f32 %v55, %v140
    %v142 = vpop.f32.mrf.mxu0
    %143 = vmatprep.mubr.f32.mxu0 0.0
    %144 = vmatmul.mubr.f32.gmra.mxu0 %v62
    %v145 = vpop.f32.mrf.mxu0
    %v146 = vadd.f32 %v55, %v145
    %v147 = vpop.f32.mrf.mxu0
    %148 = vmatprep.mubr.f32.mxu0 0.0
    %149 = vmatmul.mubr.f32.gmra.mxu0 %v65
    %v150 = vpop.f32.mrf.mxu0
    %v151 = vadd.f32 %v55, %v150
    %v152 = vpop.f32.mrf.mxu0
    %153 = vmatprep.mubr.f32.mxu0 0.0
    %154 = vmatmul.mubr.f32.gmra.mxu0 %v68
    %v155 = vpop.f32.mrf.mxu0
    %v156 = vadd.f32 %v55, %v155
    %v157 = vpop.f32.mrf.mxu0
    %158 = vdwg.mxu0
    %v159 = vld [vmem:[%s5] sm:$0xff]
    %v160 = vld [vmem:[%s5 + $0x8] sm:$0xff]
    %v161 = vld [vmem:[%s5 + $0x10] sm:$0xff]
    %v162 = vld [vmem:[%s5 + $0x18] sm:$0xff]
    %v163 = vld [vmem:[%s5 + $0x20] sm:$0xff]
    %v164 = vld [vmem:[%s5 + $0x28] sm:$0xff]
    %v165 = vld [vmem:[%s5 + $0x30] sm:$0xff]
    %v166 = vld [vmem:[%s5 + $0x38] sm:$0xff]
    %v167 = vld [vmem:[%s5 + $0x40] sm:$0xff]
    %v168 = vld [vmem:[%s5 + $0x48] sm:$0xff]
    %v169 = vld [vmem:[%s5 + $0x50] sm:$0xff]
    %v170 = vld [vmem:[%s5 + $0x58] sm:$0xff]
    %vm171 = vcmask 261120
    %v173 = vsel %vm171, %v159, 0
    %v176 = vsel %vm171, %v160, 0
    %v179 = vsel %vm171, %v161, 0
    %v182 = vsel %vm171, %v162, 0
    %v185 = vsel %vm171, %v163, 0
    %v188 = vsel %vm171, %v164, 0
    %v191 = vsel %vm171, %v165, 0
    %v194 = vsel %vm171, %v166, 0
    %v197 = vsel %vm171, %v167, 0
    %v200 = vsel %vm171, %v168, 0
    %v203 = vsel %vm171, %v169, 0
    %v206 = vsel %vm171, %v170, 0
    %208 = vmatprep.subr.mxu0 0.0
    %209 = vmatpush1.msra.mxu0 0.0
    %210 = vmatprep.subr.mxu0 0.0
    %211 = vmatpush1.msra.mxu0 0.0
    %212 = vmatprep.subr.mxu0 0.0
    %213 = vmatpush1.msra.mxu0 0.0
    %214 = vmatprep.subr.mxu0 0.0
    %215 = vmatpush1.msra.mxu0 0.0
    %216 = vmatprep.subr.mxu0 0.0
    %217 = vmatpush1.msra.mxu0 0.0
    %218 = vmatprep.subr.mxu0 0.0
    %219 = vmatpush1.msra.mxu0 0.0
    %220 = vmatprep.subr.mxu0 0.0
    %221 = vmatpush1.msra.mxu0 0.0
    %222 = vmatprep.subr.mxu0 0.0
    %223 = vmatpush1.msra.mxu0 0.0
    %224 = vmatprep.subr.mxu0 0.0
    %225 = vmatpush1.msra.mxu0 0.0
    %226 = vmatprep.subr.mxu0 0.0
    %227 = vmatpush1.msra.mxu0 0.0
    %228 = vmatprep.subr.mxu0 0.0
    %229 = vmatpush1.msra.mxu0 0.0
    %230 = vmatprep.subr.mxu0 0.0
    %231 = vmatpush1.msra.mxu0 0.0
    %232 = vmatprep.subr.mxu0 0.0
    %233 = vmatpush1.msra.mxu0 %v156
    %234 = vmatprep.subr.mxu0 0.0
    %235 = vmatpush1.msra.mxu0 %v151
    %236 = vmatprep.subr.mxu0 0.0
    %237 = vmatpush1.msra.mxu0 %v146
    %238 = vmatprep.subr.mxu0 0.0
    %239 = vmatpush1.msra.mxu0 %v141
    %240 = vmatprep.subr.mxu0 0.0
    %241 = vmatpush2.msra.mxu0 0.0
    %242 = vmatprep.subr.mxu0 0.0
    %243 = vmatpush2.msra.mxu0 0.0
    %244 = vmatprep.subr.mxu0 0.0
    %245 = vmatpush2.msra.mxu0 0.0
    %246 = vmatprep.subr.mxu0 0.0
    %247 = vmatpush2.msra.mxu0 0.0
    %248 = vmatprep.subr.mxu0 0.0
    %249 = vmatpush2.msra.mxu0 0.0
    %250 = vmatprep.subr.mxu0 0.0
    %251 = vmatpush2.msra.mxu0 0.0
    %252 = vmatprep.subr.mxu0 0.0
    %253 = vmatpush2.msra.mxu0 0.0
    %254 = vmatprep.subr.mxu0 0.0
    %255 = vmatpush2.msra.mxu0 0.0
    %256 = vmatprep.subr.mxu0 0.0
    %257 = vmatpush2.msra.mxu0 0.0
    %258 = vmatprep.subr.mxu0 0.0
    %259 = vmatpush2.msra.mxu0 0.0
    %260 = vmatprep.subr.mxu0 0.0
    %261 = vmatpush2.msra.mxu0 0.0
    %262 = vmatprep.subr.mxu0 0.0
    %263 = vmatpush2.msra.mxu0 0.0
    %264 = vmatprep.subr.mxu0 0.0
    %265 = vmatpush2.msra.mxu0 0.0
    %266 = vmatprep.subr.mxu0 0.0
    %267 = vmatpush2.msra.mxu0 0.0
    %268 = vmatprep.subr.mxu0 0.0
    %269 = vmatpush2.msra.mxu0 0.0
    %270 = vmatprep.subr.mxu0 0.0
    %271 = vmatpush2.msra.mxu0 0.0
    %272 = vmatprep.mubr.f32.mxu0 0.0
    %273 = vmatmul.mubr.f32.gmra.mxu0 %v173
    %v274 = vpop.f32.mrf.mxu0
    %v275 = vadd.f32 0.0, %v274
    %v276 = vpop.f32.mrf.mxu0
    %277 = vmatprep.mubr.f32.mxu0 0.0
    %278 = vmatmul.mubr.f32.gmra.mxu0 %v176
    %v279 = vpop.f32.mrf.mxu0
    %v280 = vadd.f32 0.0, %v279
    %v281 = vpop.f32.mrf.mxu0
    %282 = vmatprep.mubr.f32.mxu0 0.0
    %283 = vmatmul.mubr.f32.gmra.mxu0 %v179
    %v284 = vpop.f32.mrf.mxu0
    %v285 = vadd.f32 0.0, %v284
    %v286 = vpop.f32.mrf.mxu0
    %287 = vmatprep.mubr.f32.mxu0 0.0
    %288 = vmatmul.mubr.f32.gmra.mxu0 %v182
    %v289 = vpop.f32.mrf.mxu0
    %v290 = vadd.f32 0.0, %v289
    %v291 = vpop.f32.mrf.mxu0
    %292 = vmatprep.mubr.f32.mxu0 0.0
    %293 = vmatmul.mubr.f32.gmra.mxu0 %v185
    %v294 = vpop.f32.mrf.mxu0
    %v295 = vadd.f32 0.0, %v294
    %v296 = vpop.f32.mrf.mxu0
    %297 = vmatprep.mubr.f32.mxu0 0.0
    %298 = vmatmul.mubr.f32.gmra.mxu0 %v188
    %v299 = vpop.f32.mrf.mxu0
    %v300 = vadd.f32 0.0, %v299
    %v301 = vpop.f32.mrf.mxu0
    %302 = vmatprep.mubr.f32.mxu0 0.0
    %303 = vmatmul.mubr.f32.gmra.mxu0 %v191
    %v304 = vpop.f32.mrf.mxu0
    %v305 = vadd.f32 0.0, %v304
    %v306 = vpop.f32.mrf.mxu0
    %307 = vmatprep.mubr.f32.mxu0 0.0
    %308 = vmatmul.mubr.f32.gmra.mxu0 %v194
    %v309 = vpop.f32.mrf.mxu0
    %v310 = vadd.f32 0.0, %v309
    %v311 = vpop.f32.mrf.mxu0
    %312 = vmatprep.mubr.f32.mxu0 0.0
    %313 = vmatmul.mubr.f32.gmra.mxu0 %v197
    %v314 = vpop.f32.mrf.mxu0
    %v315 = vadd.f32 0.0, %v314
    %v316 = vpop.f32.mrf.mxu0
    %317 = vmatprep.mubr.f32.mxu0 0.0
    %318 = vmatmul.mubr.f32.gmra.mxu0 %v200
    %v319 = vpop.f32.mrf.mxu0
    %v320 = vadd.f32 0.0, %v319
    %v321 = vpop.f32.mrf.mxu0
    %322 = vmatprep.mubr.f32.mxu0 0.0
    %323 = vmatmul.mubr.f32.gmra.mxu0 %v203
    %v324 = vpop.f32.mrf.mxu0
    %v325 = vadd.f32 0.0, %v324
    %v326 = vpop.f32.mrf.mxu0
    %327 = vmatprep.mubr.f32.mxu0 0.0
    %328 = vmatmul.mubr.f32.gmra.mxu0 %v206
    %v329 = vpop.f32.mrf.mxu0
    %v330 = vadd.f32 0.0, %v329
    %v331 = vpop.f32.mrf.mxu0
    %332 = vdwg.mxu0
    %v333 = vld [vmem:[%s4] sm:$0x1]
    %v334 = vld [vmem:[%s3] sm:$0xff]
    %v335 = vld [vmem:[%s3 + $0x8] sm:$0xff]
    %v336 = vld [vmem:[%s3 + $0x10] sm:$0xff]
    %v337 = vld [vmem:[%s3 + $0x18] sm:$0xff]
    %v339 = vsel %vm171, %v275, 0
    %v342 = vsel %vm171, %v280, 0
    %v345 = vsel %vm171, %v285, 0
    %v348 = vsel %vm171, %v290, 0
    %350 = vmatprep.subr.mxu0 0.0
    %351 = vmatpush1.msra.mxu0 0.0
    %352 = vmatprep.subr.mxu0 0.0
    %353 = vmatpush1.msra.mxu0 0.0
    %354 = vmatprep.subr.mxu0 0.0
    %355 = vmatpush1.msra.mxu0 0.0
    %356 = vmatprep.subr.mxu0 0.0
    %357 = vmatpush1.msra.mxu0 0.0
    %358 = vmatprep.subr.mxu0 0.0
    %359 = vmatpush1.msra.mxu0 0.0
    %360 = vmatprep.subr.mxu0 0.0
    %361 = vmatpush1.msra.mxu0 0.0
    %362 = vmatprep.subr.mxu0 0.0
    %363 = vmatpush1.msra.mxu0 0.0
    %364 = vmatprep.subr.mxu0 0.0
    %365 = vmatpush1.msra.mxu0 0.0
    %366 = vmatprep.subr.mxu0 0.0
    %367 = vmatpush1.msra.mxu0 0.0
    %368 = vmatprep.subr.mxu0 0.0
    %369 = vmatpush1.msra.mxu0 0.0
    %370 = vmatprep.subr.mxu0 0.0
    %371 = vmatpush1.msra.mxu0 0.0
    %372 = vmatprep.subr.mxu0 0.0
    %373 = vmatpush1.msra.mxu0 0.0
    %374 = vmatprep.subr.mxu0 0.0
    %375 = vmatpush1.msra.mxu0 %v337
    %376 = vmatprep.subr.mxu0 0.0
    %377 = vmatpush1.msra.mxu0 %v336
    %378 = vmatprep.subr.mxu0 0.0
    %379 = vmatpush1.msra.mxu0 %v335
    %380 = vmatprep.subr.mxu0 0.0
    %381 = vmatpush1.msra.mxu0 %v334
    %382 = vmatprep.subr.mxu0 0.0
    %383 = vmatpush2.msra.mxu0 0.0
    %384 = vmatprep.subr.mxu0 0.0
    %385 = vmatpush2.msra.mxu0 0.0
    %386 = vmatprep.subr.mxu0 0.0
    %387 = vmatpush2.msra.mxu0 0.0
    %388 = vmatprep.subr.mxu0 0.0
    %389 = vmatpush2.msra.mxu0 0.0
    %390 = vmatprep.subr.mxu0 0.0
    %391 = vmatpush2.msra.mxu0 0.0
    %392 = vmatprep.subr.mxu0 0.0
    %393 = vmatpush2.msra.mxu0 0.0
    %394 = vmatprep.subr.mxu0 0.0
    %395 = vmatpush2.msra.mxu0 0.0
    %396 = vmatprep.subr.mxu0 0.0
    %397 = vmatpush2.msra.mxu0 0.0
    %398 = vmatprep.subr.mxu0 0.0
    %399 = vmatpush2.msra.mxu0 0.0
    %400 = vmatprep.subr.mxu0 0.0
    %401 = vmatpush2.msra.mxu0 0.0
    %402 = vmatprep.subr.mxu0 0.0
    %403 = vmatpush2.msra.mxu0 0.0
    %404 = vmatprep.subr.mxu0 0.0
    %405 = vmatpush2.msra.mxu0 0.0
    %406 = vmatprep.subr.mxu0 0.0
    %407 = vmatpush2.msra.mxu0 0.0
    %408 = vmatprep.subr.mxu0 0.0
    %409 = vmatpush2.msra.mxu0 0.0
    %410 = vmatprep.subr.mxu0 0.0
    %411 = vmatpush2.msra.mxu0 0.0
    %412 = vmatprep.subr.mxu0 0.0
    %413 = vmatpush2.msra.mxu0 0.0
    %414 = vmatprep.mubr.f32.mxu0 0.0
    %415 = vmatmul.mubr.f32.gmra.mxu0 %v339
    %v416 = vpop.f32.mrf.mxu0
    %v417 = vadd.f32 0.0, %v416
    %v418 = vpop.f32.mrf.mxu0
    %419 = vmatprep.mubr.f32.mxu0 0.0
    %420 = vmatmul.mubr.f32.gmra.mxu0 %v342
    %v421 = vpop.f32.mrf.mxu0
    %v422 = vadd.f32 0.0, %v421
    %v423 = vpop.f32.mrf.mxu0
    %424 = vmatprep.mubr.f32.mxu0 0.0
    %425 = vmatmul.mubr.f32.gmra.mxu0 %v345
    %v426 = vpop.f32.mrf.mxu0
    %v427 = vadd.f32 0.0, %v426
    %v428 = vpop.f32.mrf.mxu0
    %429 = vmatprep.mubr.f32.mxu0 0.0
    %430 = vmatmul.mubr.f32.gmra.mxu0 %v348
    %v431 = vpop.f32.mrf.mxu0
    %v432 = vadd.f32 0.0, %v431
    %v433 = vpop.f32.mrf.mxu0
    %434 = vdwg.mxu0
    %v436 = vlaneseq
    %v437 = vshrl.u32 %v436, 7
    %v438 = vsub.s32 0, %v437
    %v439 = vrot.slane %v333, %v438
    %v441 = vadd.f32 %v439, %v417
    %v442 = vadd.f32 %v439, %v422
    %v443 = vadd.f32 %v439, %v427
    %v444 = vadd.f32 %v439, %v432
    %s445 = scalar_lea.vmem %s3, 32
    %v446 = vld [vmem:[%s445] sm:$0xff]
    %v447 = vld [vmem:[%s445 + $0x8] sm:$0xff]
    %v448 = vld [vmem:[%s445 + $0x10] sm:$0xff]
    %v449 = vld [vmem:[%s445 + $0x18] sm:$0xff]
    %v451 = vsel %vm171, %v295, 0
    %v454 = vsel %vm171, %v300, 0
    %v457 = vsel %vm171, %v305, 0
    %v460 = vsel %vm171, %v310, 0
    %462 = vmatprep.subr.mxu0 0.0
    %463 = vmatpush1.msra.mxu0 0.0
    %464 = vmatprep.subr.mxu0 0.0
    %465 = vmatpush1.msra.mxu0 0.0
    %466 = vmatprep.subr.mxu0 0.0
    %467 = vmatpush1.msra.mxu0 0.0
    %468 = vmatprep.subr.mxu0 0.0
    %469 = vmatpush1.msra.mxu0 0.0
    %470 = vmatprep.subr.mxu0 0.0
    %471 = vmatpush1.msra.mxu0 0.0
    %472 = vmatprep.subr.mxu0 0.0
    %473 = vmatpush1.msra.mxu0 0.0
    %474 = vmatprep.subr.mxu0 0.0
    %475 = vmatpush1.msra.mxu0 0.0
    %476 = vmatprep.subr.mxu0 0.0
    %477 = vmatpush1.msra.mxu0 0.0
    %478 = vmatprep.subr.mxu0 0.0
    %479 = vmatpush1.msra.mxu0 0.0
    %480 = vmatprep.subr.mxu0 0.0
    %481 = vmatpush1.msra.mxu0 0.0
    %482 = vmatprep.subr.mxu0 0.0
    %483 = vmatpush1.msra.mxu0 0.0
    %484 = vmatprep.subr.mxu0 0.0
    %485 = vmatpush1.msra.mxu0 0.0
    %486 = vmatprep.subr.mxu0 0.0
    %487 = vmatpush1.msra.mxu0 %v449
    %488 = vmatprep.subr.mxu0 0.0
    %489 = vmatpush1.msra.mxu0 %v448
    %490 = vmatprep.subr.mxu0 0.0
    %491 = vmatpush1.msra.mxu0 %v447
    %492 = vmatprep.subr.mxu0 0.0
    %493 = vmatpush1.msra.mxu0 %v446
    %494 = vmatprep.subr.mxu0 0.0
    %495 = vmatpush2.msra.mxu0 0.0
    %496 = vmatprep.subr.mxu0 0.0
    %497 = vmatpush2.msra.mxu0 0.0
    %498 = vmatprep.subr.mxu0 0.0
    %499 = vmatpush2.msra.mxu0 0.0
    %500 = vmatprep.subr.mxu0 0.0
    %501 = vmatpush2.msra.mxu0 0.0
    %502 = vmatprep.subr.mxu0 0.0
    %503 = vmatpush2.msra.mxu0 0.0
    %504 = vmatprep.subr.mxu0 0.0
    %505 = vmatpush2.msra.mxu0 0.0
    %506 = vmatprep.subr.mxu0 0.0
    %507 = vmatpush2.msra.mxu0 0.0
    %508 = vmatprep.subr.mxu0 0.0
    %509 = vmatpush2.msra.mxu0 0.0
    %510 = vmatprep.subr.mxu0 0.0
    %511 = vmatpush2.msra.mxu0 0.0
    %512 = vmatprep.subr.mxu0 0.0
    %513 = vmatpush2.msra.mxu0 0.0
    %514 = vmatprep.subr.mxu0 0.0
    %515 = vmatpush2.msra.mxu0 0.0
    %516 = vmatprep.subr.mxu0 0.0
    %517 = vmatpush2.msra.mxu0 0.0
    %518 = vmatprep.subr.mxu0 0.0
    %519 = vmatpush2.msra.mxu0 0.0
    %520 = vmatprep.subr.mxu0 0.0
    %521 = vmatpush2.msra.mxu0 0.0
    %522 = vmatprep.subr.mxu0 0.0
    %523 = vmatpush2.msra.mxu0 0.0
    %524 = vmatprep.subr.mxu0 0.0
    %525 = vmatpush2.msra.mxu0 0.0
    %526 = vmatprep.mubr.f32.mxu0 0.0
    %527 = vmatmul.mubr.f32.gmra.mxu0 %v451
    %v528 = vpop.f32.mrf.mxu0
    %v529 = vadd.f32 0.0, %v528
    %v530 = vpop.f32.mrf.mxu0
    %531 = vmatprep.mubr.f32.mxu0 0.0
    %532 = vmatmul.mubr.f32.gmra.mxu0 %v454
    %v533 = vpop.f32.mrf.mxu0
    %v534 = vadd.f32 0.0, %v533
    %v535 = vpop.f32.mrf.mxu0
    %536 = vmatprep.mubr.f32.mxu0 0.0
    %537 = vmatmul.mubr.f32.gmra.mxu0 %v457
    %v538 = vpop.f32.mrf.mxu0
    %v539 = vadd.f32 0.0, %v538
    %v540 = vpop.f32.mrf.mxu0
    %541 = vmatprep.mubr.f32.mxu0 0.0
    %542 = vmatmul.mubr.f32.gmra.mxu0 %v460
    %v543 = vpop.f32.mrf.mxu0
    %v544 = vadd.f32 0.0, %v543
    %v545 = vpop.f32.mrf.mxu0
    %546 = vdwg.mxu0
    %v547 = vadd.f32 %v441, %v529
    %v548 = vadd.f32 %v442, %v534
    %v549 = vadd.f32 %v443, %v539
    %v550 = vadd.f32 %v444, %v544
    %s551 = scalar_lea.vmem %s3, 64
    %v552 = vld [vmem:[%s551] sm:$0xff]
    %v553 = vld [vmem:[%s551 + $0x8] sm:$0xff]
    %v554 = vld [vmem:[%s551 + $0x10] sm:$0xff]
    %v555 = vld [vmem:[%s551 + $0x18] sm:$0xff]
    %v557 = vsel %vm171, %v315, 0
    %v560 = vsel %vm171, %v320, 0
    %v563 = vsel %vm171, %v325, 0
    %v566 = vsel %vm171, %v330, 0
    %568 = vmatprep.subr.mxu0 0.0
    %569 = vmatpush1.msra.mxu0 0.0
    %570 = vmatprep.subr.mxu0 0.0
    %571 = vmatpush1.msra.mxu0 0.0
    %572 = vmatprep.subr.mxu0 0.0
    %573 = vmatpush1.msra.mxu0 0.0
    %574 = vmatprep.subr.mxu0 0.0
    %575 = vmatpush1.msra.mxu0 0.0
    %576 = vmatprep.subr.mxu0 0.0
    %577 = vmatpush1.msra.mxu0 0.0
    %578 = vmatprep.subr.mxu0 0.0
    %579 = vmatpush1.msra.mxu0 0.0
    %580 = vmatprep.subr.mxu0 0.0
    %581 = vmatpush1.msra.mxu0 0.0
    %582 = vmatprep.subr.mxu0 0.0
    %583 = vmatpush1.msra.mxu0 0.0
    %584 = vmatprep.subr.mxu0 0.0
    %585 = vmatpush1.msra.mxu0 0.0
    %586 = vmatprep.subr.mxu0 0.0
    %587 = vmatpush1.msra.mxu0 0.0
    %588 = vmatprep.subr.mxu0 0.0
    %589 = vmatpush1.msra.mxu0 0.0
    %590 = vmatprep.subr.mxu0 0.0
    %591 = vmatpush1.msra.mxu0 0.0
    %592 = vmatprep.subr.mxu0 0.0
    %593 = vmatpush1.msra.mxu0 %v555
    %594 = vmatprep.subr.mxu0 0.0
    %595 = vmatpush1.msra.mxu0 %v554
    %596 = vmatprep.subr.mxu0 0.0
    %597 = vmatpush1.msra.mxu0 %v553
    %598 = vmatprep.subr.mxu0 0.0
    %599 = vmatpush1.msra.mxu0 %v552
    %600 = vmatprep.subr.mxu0 0.0
    %601 = vmatpush2.msra.mxu0 0.0
    %602 = vmatprep.subr.mxu0 0.0
    %603 = vmatpush2.msra.mxu0 0.0
    %604 = vmatprep.subr.mxu0 0.0
    %605 = vmatpush2.msra.mxu0 0.0
    %606 = vmatprep.subr.mxu0 0.0
    %607 = vmatpush2.msra.mxu0 0.0
    %608 = vmatprep.subr.mxu0 0.0
    %609 = vmatpush2.msra.mxu0 0.0
    %610 = vmatprep.subr.mxu0 0.0
    %611 = vmatpush2.msra.mxu0 0.0
    %612 = vmatprep.subr.mxu0 0.0
    %613 = vmatpush2.msra.mxu0 0.0
    %614 = vmatprep.subr.mxu0 0.0
    %615 = vmatpush2.msra.mxu0 0.0
    %616 = vmatprep.subr.mxu0 0.0
    %617 = vmatpush2.msra.mxu0 0.0
    %618 = vmatprep.subr.mxu0 0.0
    %619 = vmatpush2.msra.mxu0 0.0
    %620 = vmatprep.subr.mxu0 0.0
    %621 = vmatpush2.msra.mxu0 0.0
    %622 = vmatprep.subr.mxu0 0.0
    %623 = vmatpush2.msra.mxu0 0.0
    %624 = vmatprep.subr.mxu0 0.0
    %625 = vmatpush2.msra.mxu0 0.0
    %626 = vmatprep.subr.mxu0 0.0
    %627 = vmatpush2.msra.mxu0 0.0
    %628 = vmatprep.subr.mxu0 0.0
    %629 = vmatpush2.msra.mxu0 0.0
    %630 = vmatprep.subr.mxu0 0.0
    %631 = vmatpush2.msra.mxu0 0.0
    %632 = vmatprep.mubr.f32.mxu0 0.0
    %633 = vmatmul.mubr.f32.gmra.mxu0 %v557
    %v634 = vpop.f32.mrf.mxu0
    %v635 = vadd.f32 0.0, %v634
    %v636 = vpop.f32.mrf.mxu0
    %637 = vmatprep.mubr.f32.mxu0 0.0
    %638 = vmatmul.mubr.f32.gmra.mxu0 %v560
    %v639 = vpop.f32.mrf.mxu0
    %v640 = vadd.f32 0.0, %v639
    %v641 = vpop.f32.mrf.mxu0
    %642 = vmatprep.mubr.f32.mxu0 0.0
    %643 = vmatmul.mubr.f32.gmra.mxu0 %v563
    %v644 = vpop.f32.mrf.mxu0
    %v645 = vadd.f32 0.0, %v644
    %v646 = vpop.f32.mrf.mxu0
    %647 = vmatprep.mubr.f32.mxu0 0.0
    %648 = vmatmul.mubr.f32.gmra.mxu0 %v566
    %v649 = vpop.f32.mrf.mxu0
    %v650 = vadd.f32 0.0, %v649
    %v651 = vpop.f32.mrf.mxu0
    %652 = vdwg.mxu0
    %v653 = vadd.f32 %v547, %v635
    %v654 = vadd.f32 %v548, %v640
    %v655 = vadd.f32 %v549, %v645
    %v656 = vadd.f32 %v550, %v650
    %v657 = vmax.f32 %v653, 0.0
    %v658 = vmax.f32 %v654, 0.0
    %v659 = vmax.f32 %v655, 0.0
    %v660 = vmax.f32 %v656, 0.0
    %v661 = vld [vmem:[%s6] sm:$0xff]
    %v662 = vld [vmem:[%s6 + $0x8] sm:$0xff]
    %v663 = vld [vmem:[%s6 + $0x10] sm:$0xff]
    %v664 = vld [vmem:[%s6 + $0x18] sm:$0xff]
    %v665 = vld [vmem:[%s6 + $0x20] sm:$0xff]
    %v666 = vld [vmem:[%s6 + $0x28] sm:$0xff]
    %v668 = vsel %vm171, %v661, 0
    %v671 = vsel %vm171, %v662, 0
    %v674 = vsel %vm171, %v663, 0
    %v677 = vsel %vm171, %v664, 0
    %v680 = vsel %vm171, %v665, 0
    %v683 = vsel %vm171, %v666, 0
    %685 = vmatprep.subr.mxu0 0.0
    %686 = vmatpush1.msra.mxu0 0.0
    %687 = vmatprep.subr.mxu0 0.0
    %688 = vmatpush1.msra.mxu0 0.0
    %689 = vmatprep.subr.mxu0 0.0
    %690 = vmatpush1.msra.mxu0 0.0
    %691 = vmatprep.subr.mxu0 0.0
    %692 = vmatpush1.msra.mxu0 0.0
    %693 = vmatprep.subr.mxu0 0.0
    %694 = vmatpush1.msra.mxu0 0.0
    %695 = vmatprep.subr.mxu0 0.0
    %696 = vmatpush1.msra.mxu0 0.0
    %697 = vmatprep.subr.mxu0 0.0
    %698 = vmatpush1.msra.mxu0 0.0
    %699 = vmatprep.subr.mxu0 0.0
    %700 = vmatpush1.msra.mxu0 0.0
    %701 = vmatprep.subr.mxu0 0.0
    %702 = vmatpush1.msra.mxu0 0.0
    %703 = vmatprep.subr.mxu0 0.0
    %704 = vmatpush1.msra.mxu0 0.0
    %705 = vmatprep.subr.mxu0 0.0
    %706 = vmatpush1.msra.mxu0 0.0
    %707 = vmatprep.subr.mxu0 0.0
    %708 = vmatpush1.msra.mxu0 0.0
    %709 = vmatprep.subr.mxu0 0.0
    %710 = vmatpush1.msra.mxu0 %v660
    %711 = vmatprep.subr.mxu0 0.0
    %712 = vmatpush1.msra.mxu0 %v659
    %713 = vmatprep.subr.mxu0 0.0
    %714 = vmatpush1.msra.mxu0 %v658
    %715 = vmatprep.subr.mxu0 0.0
    %716 = vmatpush1.msra.mxu0 %v657
    %717 = vmatprep.subr.mxu0 0.0
    %718 = vmatpush2.msra.mxu0 0.0
    %719 = vmatprep.subr.mxu0 0.0
    %720 = vmatpush2.msra.mxu0 0.0
    %721 = vmatprep.subr.mxu0 0.0
    %722 = vmatpush2.msra.mxu0 0.0
    %723 = vmatprep.subr.mxu0 0.0
    %724 = vmatpush2.msra.mxu0 0.0
    %725 = vmatprep.subr.mxu0 0.0
    %726 = vmatpush2.msra.mxu0 0.0
    %727 = vmatprep.subr.mxu0 0.0
    %728 = vmatpush2.msra.mxu0 0.0
    %729 = vmatprep.subr.mxu0 0.0
    %730 = vmatpush2.msra.mxu0 0.0
    %731 = vmatprep.subr.mxu0 0.0
    %732 = vmatpush2.msra.mxu0 0.0
    %733 = vmatprep.subr.mxu0 0.0
    %734 = vmatpush2.msra.mxu0 0.0
    %735 = vmatprep.subr.mxu0 0.0
    %736 = vmatpush2.msra.mxu0 0.0
    %737 = vmatprep.subr.mxu0 0.0
    %738 = vmatpush2.msra.mxu0 0.0
    %739 = vmatprep.subr.mxu0 0.0
    %740 = vmatpush2.msra.mxu0 0.0
    %741 = vmatprep.subr.mxu0 0.0
    %742 = vmatpush2.msra.mxu0 0.0
    %743 = vmatprep.subr.mxu0 0.0
    %744 = vmatpush2.msra.mxu0 0.0
    %745 = vmatprep.subr.mxu0 0.0
    %746 = vmatpush2.msra.mxu0 0.0
    %747 = vmatprep.subr.mxu0 0.0
    %748 = vmatpush2.msra.mxu0 0.0
    %749 = vmatprep.mubr.f32.mxu0 0.0
    %750 = vmatmul.mubr.f32.gmra.mxu0 %v668
    %v751 = vpop.f32.mrf.mxu0
    %v752 = vadd.f32 0.0, %v751
    %v753 = vpop.f32.mrf.mxu0
    %754 = vmatprep.mubr.f32.mxu0 0.0
    %755 = vmatmul.mubr.f32.gmra.mxu0 %v671
    %v756 = vpop.f32.mrf.mxu0
    %v757 = vadd.f32 0.0, %v756
    %v758 = vpop.f32.mrf.mxu0
    %759 = vmatprep.mubr.f32.mxu0 0.0
    %760 = vmatmul.mubr.f32.gmra.mxu0 %v674
    %v761 = vpop.f32.mrf.mxu0
    %v762 = vadd.f32 0.0, %v761
    %v763 = vpop.f32.mrf.mxu0
    %764 = vmatprep.mubr.f32.mxu0 0.0
    %765 = vmatmul.mubr.f32.gmra.mxu0 %v677
    %v766 = vpop.f32.mrf.mxu0
    %v767 = vadd.f32 0.0, %v766
    %v768 = vpop.f32.mrf.mxu0
    %769 = vmatprep.mubr.f32.mxu0 0.0
    %770 = vmatmul.mubr.f32.gmra.mxu0 %v680
    %v771 = vpop.f32.mrf.mxu0
    %v772 = vadd.f32 0.0, %v771
    %v773 = vpop.f32.mrf.mxu0
    %774 = vmatprep.mubr.f32.mxu0 0.0
    %775 = vmatmul.mubr.f32.gmra.mxu0 %v683
    %v776 = vpop.f32.mrf.mxu0
    %v777 = vadd.f32 0.0, %v776
    %v778 = vpop.f32.mrf.mxu0
    %779 = vdwg.mxu0
    %s780 = scalar_lea.vmem %s4, 1
    %v781 = vld [vmem:[%s780] sm:$0x1]
    %s782 = scalar_lea.vmem %s3, 96
    %v783 = vld [vmem:[%s782] sm:$0xff]
    %v784 = vld [vmem:[%s782 + $0x8] sm:$0xff]
    %v785 = vld [vmem:[%s782 + $0x10] sm:$0xff]
    %v786 = vld [vmem:[%s782 + $0x18] sm:$0xff]
    %v788 = vsel %vm171, %v752, 0
    %v791 = vsel %vm171, %v757, 0
    %793 = vmatprep.subr.mxu0 0.0
    %794 = vmatpush1.msra.mxu0 0.0
    %795 = vmatprep.subr.mxu0 0.0
    %796 = vmatpush1.msra.mxu0 0.0
    %797 = vmatprep.subr.mxu0 0.0
    %798 = vmatpush1.msra.mxu0 0.0
    %799 = vmatprep.subr.mxu0 0.0
    %800 = vmatpush1.msra.mxu0 0.0
    %801 = vmatprep.subr.mxu0 0.0
    %802 = vmatpush1.msra.mxu0 0.0
    %803 = vmatprep.subr.mxu0 0.0
    %804 = vmatpush1.msra.mxu0 0.0
    %805 = vmatprep.subr.mxu0 0.0
    %806 = vmatpush1.msra.mxu0 0.0
    %807 = vmatprep.subr.mxu0 0.0
    %808 = vmatpush1.msra.mxu0 0.0
    %809 = vmatprep.subr.mxu0 0.0
    %810 = vmatpush1.msra.mxu0 0.0
    %811 = vmatprep.subr.mxu0 0.0
    %812 = vmatpush1.msra.mxu0 0.0
    %813 = vmatprep.subr.mxu0 0.0
    %814 = vmatpush1.msra.mxu0 0.0
    %815 = vmatprep.subr.mxu0 0.0
    %816 = vmatpush1.msra.mxu0 0.0
    %817 = vmatprep.subr.mxu0 0.0
    %818 = vmatpush1.msra.mxu0 %v786
    %819 = vmatprep.subr.mxu0 0.0
    %820 = vmatpush1.msra.mxu0 %v785
    %821 = vmatprep.subr.mxu0 0.0
    %822 = vmatpush1.msra.mxu0 %v784
    %823 = vmatprep.subr.mxu0 0.0
    %824 = vmatpush1.msra.mxu0 %v783
    %825 = vmatprep.subr.mxu0 0.0
    %826 = vmatpush2.msra.mxu0 0.0
    %827 = vmatprep.subr.mxu0 0.0
    %828 = vmatpush2.msra.mxu0 0.0
    %829 = vmatprep.subr.mxu0 0.0
    %830 = vmatpush2.msra.mxu0 0.0
    %831 = vmatprep.subr.mxu0 0.0
    %832 = vmatpush2.msra.mxu0 0.0
    %833 = vmatprep.subr.mxu0 0.0
    %834 = vmatpush2.msra.mxu0 0.0
    %835 = vmatprep.subr.mxu0 0.0
    %836 = vmatpush2.msra.mxu0 0.0
    %837 = vmatprep.subr.mxu0 0.0
    %838 = vmatpush2.msra.mxu0 0.0
    %839 = vmatprep.subr.mxu0 0.0
    %840 = vmatpush2.msra.mxu0 0.0
    %841 = vmatprep.subr.mxu0 0.0
    %842 = vmatpush2.msra.mxu0 0.0
    %843 = vmatprep.subr.mxu0 0.0
    %844 = vmatpush2.msra.mxu0 0.0
    %845 = vmatprep.subr.mxu0 0.0
    %846 = vmatpush2.msra.mxu0 0.0
    %847 = vmatprep.subr.mxu0 0.0
    %848 = vmatpush2.msra.mxu0 0.0
    %849 = vmatprep.subr.mxu0 0.0
    %850 = vmatpush2.msra.mxu0 0.0
    %851 = vmatprep.subr.mxu0 0.0
    %852 = vmatpush2.msra.mxu0 0.0
    %853 = vmatprep.subr.mxu0 0.0
    %854 = vmatpush2.msra.mxu0 0.0
    %855 = vmatprep.subr.mxu0 0.0
    %856 = vmatpush2.msra.mxu0 0.0
    %857 = vmatprep.mubr.f32.mxu0 0.0
    %858 = vmatmul.mubr.f32.gmra.mxu0 %v788
    %v859 = vpop.f32.mrf.mxu0
    %v860 = vadd.f32 0.0, %v859
    %v861 = vpop.f32.mrf.mxu0
    %862 = vmatprep.mubr.f32.mxu0 0.0
    %863 = vmatmul.mubr.f32.gmra.mxu0 %v791
    %v864 = vpop.f32.mrf.mxu0
    %v865 = vadd.f32 0.0, %v864
    %v866 = vpop.f32.mrf.mxu0
    %867 = vdwg.mxu0
    %v869 = vlaneseq
    %v870 = vshrl.u32 %v869, 7
    %v871 = vsub.s32 0, %v870
    %v872 = vrot.slane %v781, %v871
    %v874 = vadd.f32 %v872, %v860
    %v875 = vadd.f32 %v872, %v865
    %s876 = scalar_lea.vmem %s3, 128
    %v877 = vld [vmem:[%s876] sm:$0xff]
    %v878 = vld [vmem:[%s876 + $0x8] sm:$0xff]
    %v879 = vld [vmem:[%s876 + $0x10] sm:$0xff]
    %v880 = vld [vmem:[%s876 + $0x18] sm:$0xff]
    %v882 = vsel %vm171, %v762, 0
    %v885 = vsel %vm171, %v767, 0
    %887 = vmatprep.subr.mxu0 0.0
    %888 = vmatpush1.msra.mxu0 0.0
    %889 = vmatprep.subr.mxu0 0.0
    %890 = vmatpush1.msra.mxu0 0.0
    %891 = vmatprep.subr.mxu0 0.0
    %892 = vmatpush1.msra.mxu0 0.0
    %893 = vmatprep.subr.mxu0 0.0
    %894 = vmatpush1.msra.mxu0 0.0
    %895 = vmatprep.subr.mxu0 0.0
    %896 = vmatpush1.msra.mxu0 0.0
    %897 = vmatprep.subr.mxu0 0.0
    %898 = vmatpush1.msra.mxu0 0.0
    %899 = vmatprep.subr.mxu0 0.0
    %900 = vmatpush1.msra.mxu0 0.0
    %901 = vmatprep.subr.mxu0 0.0
    %902 = vmatpush1.msra.mxu0 0.0
    %903 = vmatprep.subr.mxu0 0.0
    %904 = vmatpush1.msra.mxu0 0.0
    %905 = vmatprep.subr.mxu0 0.0
    %906 = vmatpush1.msra.mxu0 0.0
    %907 = vmatprep.subr.mxu0 0.0
    %908 = vmatpush1.msra.mxu0 0.0
    %909 = vmatprep.subr.mxu0 0.0
    %910 = vmatpush1.msra.mxu0 0.0
    %911 = vmatprep.subr.mxu0 0.0
    %912 = vmatpush1.msra.mxu0 %v880
    %913 = vmatprep.subr.mxu0 0.0
    %914 = vmatpush1.msra.mxu0 %v879
    %915 = vmatprep.subr.mxu0 0.0
    %916 = vmatpush1.msra.mxu0 %v878
    %917 = vmatprep.subr.mxu0 0.0
    %918 = vmatpush1.msra.mxu0 %v877
    %919 = vmatprep.subr.mxu0 0.0
    %920 = vmatpush2.msra.mxu0 0.0
    %921 = vmatprep.subr.mxu0 0.0
    %922 = vmatpush2.msra.mxu0 0.0
    %923 = vmatprep.subr.mxu0 0.0
    %924 = vmatpush2.msra.mxu0 0.0
    %925 = vmatprep.subr.mxu0 0.0
    %926 = vmatpush2.msra.mxu0 0.0
    %927 = vmatprep.subr.mxu0 0.0
    %928 = vmatpush2.msra.mxu0 0.0
    %929 = vmatprep.subr.mxu0 0.0
    %930 = vmatpush2.msra.mxu0 0.0
    %931 = vmatprep.subr.mxu0 0.0
    %932 = vmatpush2.msra.mxu0 0.0
    %933 = vmatprep.subr.mxu0 0.0
    %934 = vmatpush2.msra.mxu0 0.0
    %935 = vmatprep.subr.mxu0 0.0
    %936 = vmatpush2.msra.mxu0 0.0
    %937 = vmatprep.subr.mxu0 0.0
    %938 = vmatpush2.msra.mxu0 0.0
    %939 = vmatprep.subr.mxu0 0.0
    %940 = vmatpush2.msra.mxu0 0.0
    %941 = vmatprep.subr.mxu0 0.0
    %942 = vmatpush2.msra.mxu0 0.0
    %943 = vmatprep.subr.mxu0 0.0
    %944 = vmatpush2.msra.mxu0 0.0
    %945 = vmatprep.subr.mxu0 0.0
    %946 = vmatpush2.msra.mxu0 0.0
    %947 = vmatprep.subr.mxu0 0.0
    %948 = vmatpush2.msra.mxu0 0.0
    %949 = vmatprep.subr.mxu0 0.0
    %950 = vmatpush2.msra.mxu0 0.0
    %951 = vmatprep.mubr.f32.mxu0 0.0
    %952 = vmatmul.mubr.f32.gmra.mxu0 %v882
    %v953 = vpop.f32.mrf.mxu0
    %v954 = vadd.f32 0.0, %v953
    %v955 = vpop.f32.mrf.mxu0
    %956 = vmatprep.mubr.f32.mxu0 0.0
    %957 = vmatmul.mubr.f32.gmra.mxu0 %v885
    %v958 = vpop.f32.mrf.mxu0
    %v959 = vadd.f32 0.0, %v958
    %v960 = vpop.f32.mrf.mxu0
    %961 = vdwg.mxu0
    %v962 = vadd.f32 %v874, %v954
    %v963 = vadd.f32 %v875, %v959
    %s964 = scalar_lea.vmem %s3, 160
    %v965 = vld [vmem:[%s964] sm:$0xff]
    %v966 = vld [vmem:[%s964 + $0x8] sm:$0xff]
    %v967 = vld [vmem:[%s964 + $0x10] sm:$0xff]
    %v968 = vld [vmem:[%s964 + $0x18] sm:$0xff]
    %v970 = vsel %vm171, %v772, 0
    %v973 = vsel %vm171, %v777, 0
    %975 = vmatprep.subr.mxu0 0.0
    %976 = vmatpush1.msra.mxu0 0.0
    %977 = vmatprep.subr.mxu0 0.0
    %978 = vmatpush1.msra.mxu0 0.0
    %979 = vmatprep.subr.mxu0 0.0
    %980 = vmatpush1.msra.mxu0 0.0
    %981 = vmatprep.subr.mxu0 0.0
    %982 = vmatpush1.msra.mxu0 0.0
    %983 = vmatprep.subr.mxu0 0.0
    %984 = vmatpush1.msra.mxu0 0.0
    %985 = vmatprep.subr.mxu0 0.0
    %986 = vmatpush1.msra.mxu0 0.0
    %987 = vmatprep.subr.mxu0 0.0
    %988 = vmatpush1.msra.mxu0 0.0
    %989 = vmatprep.subr.mxu0 0.0
    %990 = vmatpush1.msra.mxu0 0.0
    %991 = vmatprep.subr.mxu0 0.0
    %992 = vmatpush1.msra.mxu0 0.0
    %993 = vmatprep.subr.mxu0 0.0
    %994 = vmatpush1.msra.mxu0 0.0
    %995 = vmatprep.subr.mxu0 0.0
    %996 = vmatpush1.msra.mxu0 0.0
    %997 = vmatprep.subr.mxu0 0.0
    %998 = vmatpush1.msra.mxu0 0.0
    %999 = vmatprep.subr.mxu0 0.0
    %1000 = vmatpush1.msra.mxu0 %v968
    %1001 = vmatprep.subr.mxu0 0.0
    %1002 = vmatpush1.msra.mxu0 %v967
    %1003 = vmatprep.subr.mxu0 0.0
    %1004 = vmatpush1.msra.mxu0 %v966
    %1005 = vmatprep.subr.mxu0 0.0
    %1006 = vmatpush1.msra.mxu0 %v965
    %1007 = vmatprep.subr.mxu0 0.0
    %1008 = vmatpush2.msra.mxu0 0.0
    %1009 = vmatprep.subr.mxu0 0.0
    %1010 = vmatpush2.msra.mxu0 0.0
    %1011 = vmatprep.subr.mxu0 0.0
    %1012 = vmatpush2.msra.mxu0 0.0
    %1013 = vmatprep.subr.mxu0 0.0
    %1014 = vmatpush2.msra.mxu0 0.0
    %1015 = vmatprep.subr.mxu0 0.0
    %1016 = vmatpush2.msra.mxu0 0.0
    %1017 = vmatprep.subr.mxu0 0.0
    %1018 = vmatpush2.msra.mxu0 0.0
    %1019 = vmatprep.subr.mxu0 0.0
    %1020 = vmatpush2.msra.mxu0 0.0
    %1021 = vmatprep.subr.mxu0 0.0
    %1022 = vmatpush2.msra.mxu0 0.0
    %1023 = vmatprep.subr.mxu0 0.0
    %1024 = vmatpush2.msra.mxu0 0.0
    %1025 = vmatprep.subr.mxu0 0.0
    %1026 = vmatpush2.msra.mxu0 0.0
    %1027 = vmatprep.subr.mxu0 0.0
    %1028 = vmatpush2.msra.mxu0 0.0
    %1029 = vmatprep.subr.mxu0 0.0
    %1030 = vmatpush2.msra.mxu0 0.0
    %1031 = vmatprep.subr.mxu0 0.0
    %1032 = vmatpush2.msra.mxu0 0.0
    %1033 = vmatprep.subr.mxu0 0.0
    %1034 = vmatpush2.msra.mxu0 0.0
    %1035 = vmatprep.subr.mxu0 0.0
    %1036 = vmatpush2.msra.mxu0 0.0
    %1037 = vmatprep.subr.mxu0 0.0
    %1038 = vmatpush2.msra.mxu0 0.0
    %1039 = vmatprep.mubr.f32.mxu0 0.0
    %1040 = vmatmul.mubr.f32.gmra.mxu0 %v970
    %v1041 = vpop.f32.mrf.mxu0
    %v1042 = vadd.f32 0.0, %v1041
    %v1043 = vpop.f32.mrf.mxu0
    %1044 = vmatprep.mubr.f32.mxu0 0.0
    %1045 = vmatmul.mubr.f32.gmra.mxu0 %v973
    %v1046 = vpop.f32.mrf.mxu0
    %v1047 = vadd.f32 0.0, %v1046
    %v1048 = vpop.f32.mrf.mxu0
    %1049 = vdwg.mxu0
    %v1050 = vadd.f32 %v962, %v1042
    %v1051 = vadd.f32 %v963, %v1047
    %v1052 = vmax.f32 %v1050, 0.0
    %v1053 = vmax.f32 %v1051, 0.0
    %v1054 = vld [vmem:[%s7] sm:$0xff]
    %vm1055 = vcmask 130048
    %v1057 = vsel %vm1055, %v1054, 0
    %1059 = vmatprep.subr.mxu0 0.0
    %1060 = vmatpush1.msra.mxu0 0.0
    %1061 = vmatprep.subr.mxu0 0.0
    %1062 = vmatpush1.msra.mxu0 0.0
    %1063 = vmatprep.subr.mxu0 0.0
    %1064 = vmatpush1.msra.mxu0 0.0
    %1065 = vmatprep.subr.mxu0 0.0
    %1066 = vmatpush1.msra.mxu0 0.0
    %1067 = vmatprep.subr.mxu0 0.0
    %1068 = vmatpush1.msra.mxu0 0.0
    %1069 = vmatprep.subr.mxu0 0.0
    %1070 = vmatpush1.msra.mxu0 0.0
    %1071 = vmatprep.subr.mxu0 0.0
    %1072 = vmatpush1.msra.mxu0 0.0
    %1073 = vmatprep.subr.mxu0 0.0
    %1074 = vmatpush1.msra.mxu0 0.0
    %1075 = vmatprep.subr.mxu0 0.0
    %1076 = vmatpush1.msra.mxu0 0.0
    %1077 = vmatprep.subr.mxu0 0.0
    %1078 = vmatpush1.msra.mxu0 0.0
    %1079 = vmatprep.subr.mxu0 0.0
    %1080 = vmatpush1.msra.mxu0 0.0
    %1081 = vmatprep.subr.mxu0 0.0
    %1082 = vmatpush1.msra.mxu0 0.0
    %1083 = vmatprep.subr.mxu0 0.0
    %1084 = vmatpush1.msra.mxu0 0.0
    %1085 = vmatprep.subr.mxu0 0.0
    %1086 = vmatpush1.msra.mxu0 0.0
    %1087 = vmatprep.subr.mxu0 0.0
    %1088 = vmatpush1.msra.mxu0 %v1053
    %1089 = vmatprep.subr.mxu0 0.0
    %1090 = vmatpush1.msra.mxu0 %v1052
    %1091 = vmatprep.subr.mxu0 0.0
    %1092 = vmatpush2.msra.mxu0 0.0
    %1093 = vmatprep.subr.mxu0 0.0
    %1094 = vmatpush2.msra.mxu0 0.0
    %1095 = vmatprep.subr.mxu0 0.0
    %1096 = vmatpush2.msra.mxu0 0.0
    %1097 = vmatprep.subr.mxu0 0.0
    %1098 = vmatpush2.msra.mxu0 0.0
    %1099 = vmatprep.subr.mxu0 0.0
    %1100 = vmatpush2.msra.mxu0 0.0
    %1101 = vmatprep.subr.mxu0 0.0
    %1102 = vmatpush2.msra.mxu0 0.0
    %1103 = vmatprep.subr.mxu0 0.0
    %1104 = vmatpush2.msra.mxu0 0.0
    %1105 = vmatprep.subr.mxu0 0.0
    %1106 = vmatpush2.msra.mxu0 0.0
    %1107 = vmatprep.subr.mxu0 0.0
    %1108 = vmatpush2.msra.mxu0 0.0
    %1109 = vmatprep.subr.mxu0 0.0
    %1110 = vmatpush2.msra.mxu0 0.0
    %1111 = vmatprep.subr.mxu0 0.0
    %1112 = vmatpush2.msra.mxu0 0.0
    %1113 = vmatprep.subr.mxu0 0.0
    %1114 = vmatpush2.msra.mxu0 0.0
    %1115 = vmatprep.subr.mxu0 0.0
    %1116 = vmatpush2.msra.mxu0 0.0
    %1117 = vmatprep.subr.mxu0 0.0
    %1118 = vmatpush2.msra.mxu0 0.0
    %1119 = vmatprep.subr.mxu0 0.0
    %1120 = vmatpush2.msra.mxu0 0.0
    %1121 = vmatprep.subr.mxu0 0.0
    %1122 = vmatpush2.msra.mxu0 0.0
    %1123 = vmatprep.mubr.f32.mxu0 0.0
    %1124 = vmatmul.mubr.f32.gmra.mxu0 %v1057
    %v1125 = vpop.f32.mrf.mxu0
    %v1126 = vadd.f32 0.0, %v1125
    %v1127 = vpop.f32.mrf.mxu0
    %1128 = vdwg.mxu0
    %v1129 = vmax.f32 %v1126, 0.0
    %v1130 = vsel %vm171, %v1129, 0.0
    %1131 = vadd.xlane.f32.xlu0 %v1130
    %v1132 = vpop.xlane.xlu0 %1131
    %v1133 = vrcp.pop 32.0
    %v1134 = vmul.f32 %v1132, %v1133
    %v1135 = vsub.f32 %v1129, %v1134
    %v1136 = vmul.f32 %v1135, %v1135
    %v1137 = vsel %vm171, %v1136, 0.0
    %1138 = vadd.xlane.f32.xlu0 %v1137
    %v1139 = vpop.xlane.xlu0 %1138
    %v1140 = vmul.f32 %v1139, %v1133
    %v1141 = vadd.f32 %v1140, 1e-05
    %v1142 = vrsqrt.pop %v1141
    %v1143 = vmul.f32 %v1135, %v1142
    %v1144 = vld [vmem:[%s9] sm:$0x1]
    %v1146 = vlaneseq
    %v1147 = vshrl.u32 %v1146, 7
    %v1148 = vsub.s32 0, %v1147
    %v1149 = vrot.slane %v1144, %v1148
    %v1151 = vmul.f32 %v1143, %v1149
    %v1152 = vld [vmem:[%s10] sm:$0x1]
    %v1154 = vlaneseq
    %v1155 = vshrl.u32 %v1154, 7
    %v1156 = vsub.s32 0, %v1155
    %v1157 = vrot.slane %v1152, %v1156
    %v1159 = vadd.f32 %v1151, %v1157
    %v1160 = vld [vmem:[%s8] sm:$0x3]
    %vm1161 = vcmask 64512
    %v1163 = vsel %vm1161, %v1160, 0
    %1165 = vmatprep.subr.mxu0 0.0
    %1166 = vmatpush1.msra.mxu0 0.0
    %1167 = vmatprep.subr.mxu0 0.0
    %1168 = vmatpush1.msra.mxu0 0.0
    %1169 = vmatprep.subr.mxu0 0.0
    %1170 = vmatpush1.msra.mxu0 0.0
    %1171 = vmatprep.subr.mxu0 0.0
    %1172 = vmatpush1.msra.mxu0 0.0
    %1173 = vmatprep.subr.mxu0 0.0
    %1174 = vmatpush1.msra.mxu0 0.0
    %1175 = vmatprep.subr.mxu0 0.0
    %1176 = vmatpush1.msra.mxu0 0.0
    %1177 = vmatprep.subr.mxu0 0.0
    %1178 = vmatpush1.msra.mxu0 0.0
    %1179 = vmatprep.subr.mxu0 0.0
    %1180 = vmatpush1.msra.mxu0 0.0
    %1181 = vmatprep.subr.mxu0 0.0
    %1182 = vmatpush1.msra.mxu0 0.0
    %1183 = vmatprep.subr.mxu0 0.0
    %1184 = vmatpush1.msra.mxu0 0.0
    %1185 = vmatprep.subr.mxu0 0.0
    %1186 = vmatpush1.msra.mxu0 0.0
    %1187 = vmatprep.subr.mxu0 0.0
    %1188 = vmatpush1.msra.mxu0 0.0
    %1189 = vmatprep.subr.mxu0 0.0
    %1190 = vmatpush1.msra.mxu0 0.0
    %1191 = vmatprep.subr.mxu0 0.0
    %1192 = vmatpush1.msra.mxu0 0.0
    %1193 = vmatprep.subr.mxu0 0.0
    %1194 = vmatpush1.msra.mxu0 0.0
    %1195 = vmatprep.subr.mxu0 0.0
    %1196 = vmatpush1.msra.mxu0 %v1159
    %1197 = vmatprep.subr.mxu0 0.0
    %1198 = vmatpush2.msra.mxu0 0.0
    %1199 = vmatprep.subr.mxu0 0.0
    %1200 = vmatpush2.msra.mxu0 0.0
    %1201 = vmatprep.subr.mxu0 0.0
    %1202 = vmatpush2.msra.mxu0 0.0
    %1203 = vmatprep.subr.mxu0 0.0
    %1204 = vmatpush2.msra.mxu0 0.0
    %1205 = vmatprep.subr.mxu0 0.0
    %1206 = vmatpush2.msra.mxu0 0.0
    %1207 = vmatprep.subr.mxu0 0.0
    %1208 = vmatpush2.msra.mxu0 0.0
    %1209 = vmatprep.subr.mxu0 0.0
    %1210 = vmatpush2.msra.mxu0 0.0
    %1211 = vmatprep.subr.mxu0 0.0
    %1212 = vmatpush2.msra.mxu0 0.0
    %1213 = vmatprep.subr.mxu0 0.0
    %1214 = vmatpush2.msra.mxu0 0.0
    %1215 = vmatprep.subr.mxu0 0.0
    %1216 = vmatpush2.msra.mxu0 0.0
    %1217 = vmatprep.subr.mxu0 0.0
    %1218 = vmatpush2.msra.mxu0 0.0
    %1219 = vmatprep.subr.mxu0 0.0
    %1220 = vmatpush2.msra.mxu0 0.0
    %1221 = vmatprep.subr.mxu0 0.0
    %1222 = vmatpush2.msra.mxu0 0.0
    %1223 = vmatprep.subr.mxu0 0.0
    %1224 = vmatpush2.msra.mxu0 0.0
    %1225 = vmatprep.subr.mxu0 0.0
    %1226 = vmatpush2.msra.mxu0 0.0
    %1227 = vmatprep.subr.mxu0 0.0
    %1228 = vmatpush2.msra.mxu0 0.0
    %1229 = vmatprep.mubr.f32.mxu0 0.0
    %1230 = vmatmul.mubr.f32.gmra.mxu0 %v1163
    %v1231 = vpop.f32.mrf.mxu0
    %v1232 = vadd.f32 0.0, %v1231
    %v1233 = vpop.f32.mrf.mxu0
    %1234 = vdwg.mxu0
    %v1235 = vld [vmem:[%s11] sm:$0xff]
    %v1236 = vld [vmem:[%s11 + $0x8] sm:$0xff]
    %v1237 = vld [vmem:[%s11 + $0x10] sm:$0xff]
    %v1238 = vld [vmem:[%s11 + $0x18] sm:$0xff]
    %v1239 = vld [vmem:[%s12] sm:$0x1]
    %v1241 = vlaneseq
    %v1242 = vshrl.u32 %v1241, 7
    %v1243 = vsub.s32 0, %v1242
    %v1244 = vrot.slane %v1239, %v1243
    %v1247 = vsel %vm171, %v1232, 0
    %1249 = vmatprep.subr.mxu0 0.0
    %1250 = vmatpush1.msra.mxu0 0.0
    %1251 = vmatprep.subr.mxu0 0.0
    %1252 = vmatpush1.msra.mxu0 0.0
    %1253 = vmatprep.subr.mxu0 0.0
    %1254 = vmatpush1.msra.mxu0 0.0
    %1255 = vmatprep.subr.mxu0 0.0
    %1256 = vmatpush1.msra.mxu0 0.0
    %1257 = vmatprep.subr.mxu0 0.0
    %1258 = vmatpush1.msra.mxu0 0.0
    %1259 = vmatprep.subr.mxu0 0.0
    %1260 = vmatpush1.msra.mxu0 0.0
    %1261 = vmatprep.subr.mxu0 0.0
    %1262 = vmatpush1.msra.mxu0 0.0
    %1263 = vmatprep.subr.mxu0 0.0
    %1264 = vmatpush1.msra.mxu0 0.0
    %1265 = vmatprep.subr.mxu0 0.0
    %1266 = vmatpush1.msra.mxu0 0.0
    %1267 = vmatprep.subr.mxu0 0.0
    %1268 = vmatpush1.msra.mxu0 0.0
    %1269 = vmatprep.subr.mxu0 0.0
    %1270 = vmatpush1.msra.mxu0 0.0
    %1271 = vmatprep.subr.mxu0 0.0
    %1272 = vmatpush1.msra.mxu0 0.0
    %1273 = vmatprep.subr.mxu0 0.0
    %1274 = vmatpush1.msra.mxu0 %v1238
    %1275 = vmatprep.subr.mxu0 0.0
    %1276 = vmatpush1.msra.mxu0 %v1237
    %1277 = vmatprep.subr.mxu0 0.0
    %1278 = vmatpush1.msra.mxu0 %v1236
    %1279 = vmatprep.subr.mxu0 0.0
    %1280 = vmatpush1.msra.mxu0 %v1235
    %1281 = vmatprep.subr.mxu0 0.0
    %1282 = vmatpush2.msra.mxu0 0.0
    %1283 = vmatprep.subr.mxu0 0.0
    %1284 = vmatpush2.msra.mxu0 0.0
    %1285 = vmatprep.subr.mxu0 0.0
    %1286 = vmatpush2.msra.mxu0 0.0
    %1287 = vmatprep.subr.mxu0 0.0
    %1288 = vmatpush2.msra.mxu0 0.0
    %1289 = vmatprep.subr.mxu0 0.0
    %1290 = vmatpush2.msra.mxu0 0.0
    %1291 = vmatprep.subr.mxu0 0.0
    %1292 = vmatpush2.msra.mxu0 0.0
    %1293 = vmatprep.subr.mxu0 0.0
    %1294 = vmatpush2.msra.mxu0 0.0
    %1295 = vmatprep.subr.mxu0 0.0
    %1296 = vmatpush2.msra.mxu0 0.0
    %1297 = vmatprep.subr.mxu0 0.0
    %1298 = vmatpush2.msra.mxu0 0.0
    %1299 = vmatprep.subr.mxu0 0.0
    %1300 = vmatpush2.msra.mxu0 0.0
    %1301 = vmatprep.subr.mxu0 0.0
    %1302 = vmatpush2.msra.mxu0 0.0
    %1303 = vmatprep.subr.mxu0 0.0
    %1304 = vmatpush2.msra.mxu0 0.0
    %1305 = vmatprep.subr.mxu0 0.0
    %1306 = vmatpush2.msra.mxu0 0.0
    %1307 = vmatprep.subr.mxu0 0.0
    %1308 = vmatpush2.msra.mxu0 0.0
    %1309 = vmatprep.subr.mxu0 0.0
    %1310 = vmatpush2.msra.mxu0 0.0
    %1311 = vmatprep.subr.mxu0 0.0
    %1312 = vmatpush2.msra.mxu0 0.0
    %1313 = vmatprep.mubr.f32.mxu0 0.0
    %1314 = vmatmul.mubr.f32.gmra.mxu0 %v1247
    %v1315 = vpop.f32.mrf.mxu0
    %v1316 = vadd.f32 %v1244, %v1315
    %v1317 = vpop.f32.mrf.mxu0
    %1318 = vdwg.mxu0
    %vm1319 = vcmask 123904
    %1320 = vst.msk [vmem:[#allocation2] sm:$0x3] %vm1319, %v1316
    // Predicated region
    $region54: #{tpu_custom_call.1} parent=1 // pred_check
      _
    $region55: #{tpu_custom_call.1} parent=1 // pred_check_branch
      %1322 = sbr.rel (0) target = $region57
    $region56: #{tpu_custom_call.1} parent=1 // pred_region
      %s1324 = ssub.s32 32, 32
      %1325 = vsyncadd [#allocation3], %s1324
      %s1327 = sshll.u32 [#allocation2], 4
      %s1328 = int_to_ptr.vmem [resolvable:$true] %s1327
      %1330 = dma.vmem_to_hbm [thread:$0]  %s1328, 32, %s13, [#allocation3]
    $region57: #{tpu_custom_call.1} parent=1 // pred_fallthru
      _
    // Predicated region
    $region58: #{tpu_custom_call.1} parent=1 // pred_check
      _
    $region59: #{tpu_custom_call.1} parent=1 // pred_check_branch
      %1332 = sbr.rel (0) target = $region61
    $region60: #{tpu_custom_call.1} parent=1 // pred_region
      %1333 = dma.done [#allocation3], 32
    $region61: #{tpu_custom_call.1} parent=1 // pred_fallthru
      _
    %1334 = vsyncpa [#allocation3], 1

</llo_original>
